<compile_context>
chip_gen: v5e
topology: v5e:2x2
jax: 0.10.0
libtpu: 0.0.40
codegen_flags: <defaults>
</compile_context>

<pallas_src>
import jax
import jax.numpy as jnp
from jax import lax
from jax.experimental import pallas as pl
from jax.experimental.pallas import tpu as pltpu


def lstm_att_kernel(inp_ref, mask_ref, wih_ref, whh_ref, b_ref,
                    wlin_ref, blin_ref, out_ref, pg_ref):
    """Single-invocation kernel: whole (small) problem lives in VMEM.

    inp_ref  : (S*B, D)     time-major flattened [ctx ; qry] input (row = t*B + b)
    mask_ref : (S, B, 1)    1.0 = valid step, 0.0 = masked step
    wih_ref  : (D, 4H)      input->gates weights (transposed, PyTorch gate order i,f,g,o)
    whh_ref  : (H, 4H)      hidden->gates weights (transposed)
    b_ref    : (1, 4H)      b_ih + b_hh
    wlin_ref : (1, H)       final linear weight (row vector)
    blin_ref : (1, 1)       final linear bias
    out_ref  : (S, B, 1)    sigmoid(lin(h_t)), time-major
    pg_ref   : (S, B, 4H)   VMEM scratch: precomputed input projection + bias
    """
    S, B, _ = out_ref.shape
    H = whh_ref.shape[0]

    # ---- hoisted input projection: one MXU-friendly matmul for all steps ----
    pre = jnp.dot(inp_ref[...], wih_ref[...],
                  preferred_element_type=jnp.float32) + b_ref[...]   # (S*B, 4H)
    pg_ref[...] = pre.reshape(S, B, 4 * H)

    # ---- hoist loop-invariant loads / broadcasts out of the recurrence ------
    whh = whh_ref[...]                                    # (H, 4H) -> stays in vregs
    wlin_b = jnp.broadcast_to(wlin_ref[...], (B, H))      # (B, H)
    blin = blin_ref[...]                                  # (1, 1)

    def step(t, carry):
        h, c = carry
        pg = pg_ref[t]                                    # (B, 4H)
        m = mask_ref[t]                                   # (B, 1)
        gates = pg + jnp.dot(h, whh, preferred_element_type=jnp.float32)
        i_g = jax.nn.sigmoid(gates[:, 0 * H:1 * H])
        f_g = jax.nn.sigmoid(gates[:, 1 * H:2 * H])
        g_g = jnp.tanh(gates[:, 2 * H:3 * H])
        o_g = jax.nn.sigmoid(gates[:, 3 * H:4 * H])
        c_new = f_g * c + i_g * g_g
        h_new = o_g * jnp.tanh(c_new)
        # state-carry masking: one vsel per state tensor
        keep = m > 0.5
        h_out = jnp.where(keep, h_new, h)
        c_out = jnp.where(keep, c_new, c)
        # output projection folded in: VPU multiply + lane reduce (no N=1 matmul)
        logit = jnp.sum(h_out * wlin_b, axis=-1, keepdims=True) + blin   # (B, 1)
        out_ref[t] = jax.nn.sigmoid(logit)
        return (h_out, c_out)

    h0 = jnp.zeros((B, H), jnp.float32)
    c0 = jnp.zeros((B, H), jnp.float32)
    lax.fori_loop(0, S, step, (h0, c0), unroll=True)


def init_params(key, qrydim, ctxdim, encdim):
    """Deterministic parameter init (uniform, PyTorch-LSTM-style ranges)."""
    D = qrydim + ctxdim
    H = encdim
    k = 1.0 / jnp.sqrt(jnp.float32(H))
    ks = jax.random.split(key, 6)
    w_ih = jax.random.uniform(ks[0], (4 * H, D), jnp.float32, -k, k)
    w_hh = jax.random.uniform(ks[1], (4 * H, H), jnp.float32, -k, k)
    b_ih = jax.random.uniform(ks[2], (4 * H,), jnp.float32, -k, k)
    b_hh = jax.random.uniform(ks[3], (4 * H,), jnp.float32, -k, k)
    w_lin = jax.random.uniform(ks[4], (1, H), jnp.float32, -k, k)
    b_lin = jax.random.uniform(ks[5], (1,), jnp.float32, -k, k)
    # pre-transpose / pre-combine for the kernel
    wihT = w_ih.T                                   # (D, 4H)
    whhT = w_hh.T                                   # (H, 4H)
    b = (b_ih + b_hh).reshape(1, 4 * H)             # (1, 4H)
    wlin = w_lin                                    # (1, H)
    blin = b_lin.reshape(1, 1)                      # (1, 1)
    return wihT, whhT, b, wlin, blin


def sigmoid_lstm_attcomp(qry, ctx, params, ctx_mask=None):
    """qry: (B, qrydim), ctx: (B, S, ctxdim), ctx_mask: (B, S) -> (B, S)."""
    B, S, ctxdim = ctx.shape
    qrydim = qry.shape[1]
    wihT, whhT, b, wlin, blin = params
    H = whhT.shape[0]
    D = ctxdim + qrydim

    # glue (plain JAX): concat + time-major flatten so the kernel can do a single
    # (S*B, D) @ (D, 4H) input projection matmul.
    inp = jnp.concatenate(
        [ctx, jnp.broadcast_to(qry[:, None, :], (B, S, qrydim))], axis=2)
    inp_flat = jnp.transpose(inp, (1, 0, 2)).reshape(S * B, D).astype(jnp.float32)

    if ctx_mask is None:
        mask = jnp.ones((S, B, 1), jnp.float32)
    else:
        mask = jnp.transpose(ctx_mask.astype(jnp.float32), (1, 0))[:, :, None]

    out = pl.pallas_call(
        lstm_att_kernel,
        out_shape=jax.ShapeDtypeStruct((S, B, 1), jnp.float32),
        in_specs=[pl.BlockSpec(memory_space=pltpu.MemorySpace.VMEM)] * 7,
        out_specs=pl.BlockSpec(memory_space=pltpu.MemorySpace.VMEM),
        scratch_shapes=[pltpu.VMEM((S, B, 4 * H), jnp.float32)],
    )(inp_flat, mask, wihT, whhT, b, wlin, blin)

    return out.reshape(S, B).T                              # (B, S)


def reference_forward(qry, ctx, params, ctx_mask=None):
    """Pure-JAX reference (same math, plain XLA) for a correctness check."""
    wihT, whhT, b, wlin, blin = params
    B, S, _ = ctx.shape
    H = whhT.shape[0]
    inp = jnp.concatenate(
        [ctx, jnp.broadcast_to(qry[:, None, :], (B, S, qry.shape[1]))], axis=2)
    if ctx_mask is None:
        ctx_mask = jnp.ones((B, S), jnp.float32)

    def step(carry, xm):
        h, c = carry
        x, m = xm
        gates = x @ wihT + h @ whhT + b
        i = jax.nn.sigmoid(gates[:, :H])
        f = jax.nn.sigmoid(gates[:, H:2 * H])
        g = jnp.tanh(gates[:, 2 * H:3 * H])
        o = jax.nn.sigmoid(gates[:, 3 * H:])
        c_new = f * c + i * g
        h_new = o * jnp.tanh(c_new)
        m = m[:, None]
        h = m * h_new + (1.0 - m) * h
        c = m * c_new + (1.0 - m) * c
        out = jax.nn.sigmoid(h @ wlin.T + blin)[:, 0]
        return (h, c), out

    xs = (jnp.transpose(inp, (1, 0, 2)).astype(jnp.float32),
          jnp.transpose(ctx_mask.astype(jnp.float32), (1, 0)))
    (_, _), outs = lax.scan(step, (jnp.zeros((B, H), jnp.float32),
                                   jnp.zeros((B, H), jnp.float32)), xs)
    return outs.T                                           # (B, S)


if __name__ == "__main__":
    # small shapes consistent with the module's forward
    B, S = 2, 8
    qrydim, ctxdim, encdim = 8, 16, 32

    key = jax.random.PRNGKey(0)
    kq, kc, kp = jax.random.split(key, 3)

    qry = jax.random.normal(kq, (B, qrydim), jnp.float32)
    ctx = jax.random.normal(kc, (B, S, ctxdim), jnp.float32)
    # mask: second example has the last two steps masked out
    ctx_mask = jnp.array([[1] * S, [1] * (S - 2) + [0, 0]], dtype=jnp.float32)

    params = init_params(kp, qrydim, ctxdim, encdim)

    out = sigmoid_lstm_attcomp(qry, ctx, params, ctx_mask)
    out = jax.block_until_ready(out)
    assert out.shape == (B, S), out.shape
    assert bool(jnp.all(jnp.isfinite(out)))

    ref = jax.block_until_ready(reference_forward(qry, ctx, params, ctx_mask))
    max_err = float(jnp.max(jnp.abs(out - ref)))
    assert max_err < 1e-2, f"mismatch vs reference: {max_err}"

    print("KERNEL_OK")
</pallas_src>

<mosaic_0001>
module attributes {stable_mosaic.version = 11 : i64} {
  func.func @lstm_att_kernel(%arg0: memref<16x24xf32, #tpu.memory_space<vmem>>, %arg1: memref<8x2x1xf32, #tpu.memory_space<vmem>>, %arg2: memref<24x128xf32, #tpu.memory_space<vmem>>, %arg3: memref<32x128xf32, #tpu.memory_space<vmem>>, %arg4: memref<1x128xf32, #tpu.memory_space<vmem>>, %arg5: memref<1x32xf32, #tpu.memory_space<vmem>>, %arg6: memref<1x1xf32, #tpu.memory_space<vmem>>, %arg7: memref<8x2x1xf32, #tpu.memory_space<vmem>>, %arg8: memref<8x2x128xf32, #tpu.memory_space<vmem>>) attributes {dimension_semantics = [], scalar_prefetch = 0 : i64, scratch_operands = 1 : i64, tpu.core_type = #tpu.core_type<tc>} {
    %c0 = arith.constant 0 : index
    %c0_0 = arith.constant 0 : index
    %0 = vector.load %arg0[%c0, %c0_0] : memref<16x24xf32, #tpu.memory_space<vmem>>, vector<16x24xf32>
    %c0_1 = arith.constant 0 : index
    %c0_2 = arith.constant 0 : index
    %1 = vector.load %arg2[%c0_1, %c0_2] : memref<24x128xf32, #tpu.memory_space<vmem>>, vector<24x128xf32>
    %cst = arith.constant dense<0.000000e+00> : vector<16x128xf32>
    %2 = tpu.matmul %0, %1, %cst {dimension_numbers = #tpu.dot_dimension_numbers<[1], [0], [0], [1], [0, 0, 1, 1], [], []>} : vector<16x24xf32>, vector<24x128xf32>, vector<16x128xf32> -> vector<16x128xf32>
    %c0_3 = arith.constant 0 : index
    %c0_4 = arith.constant 0 : index
    %3 = vector.load %arg4[%c0_3, %c0_4] : memref<1x128xf32, #tpu.memory_space<vmem>>, vector<1x128xf32>
    %4 = vector.broadcast %3 : vector<1x128xf32> to vector<16x128xf32>
    %5 = arith.addf %2, %4 : vector<16x128xf32>
    %6 = vector.shape_cast %5 : vector<16x128xf32> to vector<8x2x128xf32>
    %c0_5 = arith.constant 0 : index
    %c0_6 = arith.constant 0 : index
    %c0_7 = arith.constant 0 : index
    %7 = vector.load %arg8[%c0_5, %c0_6, %c0_7] : memref<8x2x128xf32, #tpu.memory_space<vmem>>, vector<8x2x128xf32>
    tpu.vector_store %arg8[%c0_5, %c0_6, %c0_7], %6 {strides = array<i32>} : memref<8x2x128xf32, #tpu.memory_space<vmem>>, vector<8x2x128xf32>,
    %c0_8 = arith.constant 0 : index
    %c0_9 = arith.constant 0 : index
    %8 = vector.load %arg3[%c0_8, %c0_9] : memref<32x128xf32, #tpu.memory_space<vmem>>, vector<32x128xf32>
    %c0_10 = arith.constant 0 : index
    %c0_11 = arith.constant 0 : index
    %9 = vector.load %arg5[%c0_10, %c0_11] : memref<1x32xf32, #tpu.memory_space<vmem>>, vector<1x32xf32>
    %10 = vector.shape_cast %9 : vector<1x32xf32> to vector<1x32xf32>
    %11 = vector.broadcast %10 : vector<1x32xf32> to vector<2x32xf32>
    %c0_12 = arith.constant 0 : index
    %c0_13 = arith.constant 0 : index
    %12 = vector.load %arg6[%c0_12, %c0_13] : memref<1x1xf32, #tpu.memory_space<vmem>>, vector<1x1xf32>
    %cst_14 = arith.constant 0.000000e+00 : f32
    %13 = vector.broadcast %cst_14 : f32 to vector<2x32xf32>
    %cst_15 = arith.constant 0.000000e+00 : f32
    %14 = vector.broadcast %cst_15 : f32 to vector<2x32xf32>
    %c0_i32 = arith.constant 0 : i32
    %15 = arith.index_cast %c0_i32 : i32 to index
    %c0_16 = arith.constant 0 : index
    %c0_17 = arith.constant 0 : index
    %16 = vector.load %arg8[%15, %c0_16, %c0_17] : memref<8x2x128xf32, #tpu.memory_space<vmem>>, vector<1x2x128xf32>
    %17 = vector.shape_cast %16 : vector<1x2x128xf32> to vector<2x128xf32>
    %18 = arith.index_cast %c0_i32 : i32 to index
    %c0_18 = arith.constant 0 : index
    %c0_19 = arith.constant 0 : index
    %19 = vector.load %arg1[%18, %c0_18, %c0_19] : memref<8x2x1xf32, #tpu.memory_space<vmem>>, vector<1x2x1xf32>
    %20 = vector.shape_cast %19 : vector<1x2x1xf32> to vector<2x1xf32>
    %cst_20 = arith.constant dense<0.000000e+00> : vector<2x128xf32>
    %21 = tpu.matmul %13, %8, %cst_20 {dimension_numbers = #tpu.dot_dimension_numbers<[1], [0], [0], [1], [0, 0, 1, 1], [], []>} : vector<2x32xf32>, vector<32x128xf32>, vector<2x128xf32> -> vector<2x128xf32>
    %22 = arith.addf %17, %21 : vector<2x128xf32>
    %23 = vector.extract_strided_slice %22 {offsets = [0, 0], sizes = [2, 32], strides = [1, 1]} : vector<2x128xf32> to vector<2x32xf32>
    %24 = arith.negf %23 : vector<2x32xf32>
    %25 = math.exp %24 : vector<2x32xf32>
    %cst_21 = arith.constant 1.000000e+00 : f32
    %26 = vector.broadcast %cst_21 : f32 to vector<2x32xf32>
    %27 = arith.addf %26, %25 : vector<2x32xf32>
    %28 = arith.divf %26, %27 : vector<2x32xf32>
    %29 = vector.extract_strided_slice %22 {offsets = [0, 32], sizes = [2, 32], strides = [1, 1]} : vector<2x128xf32> to vector<2x32xf32>
    %30 = arith.negf %29 : vector<2x32xf32>
    %31 = math.exp %30 : vector<2x32xf32>
    %cst_22 = arith.constant 1.000000e+00 : f32
    %32 = vector.broadcast %cst_22 : f32 to vector<2x32xf32>
    %33 = arith.addf %32, %31 : vector<2x32xf32>
    %34 = arith.divf %32, %33 : vector<2x32xf32>
    %35 = vector.extract_strided_slice %22 {offsets = [0, 64], sizes = [2, 32], strides = [1, 1]} : vector<2x128xf32> to vector<2x32xf32>
    %36 = math.tanh %35 : vector<2x32xf32>
    %37 = vector.extract_strided_slice %22 {offsets = [0, 96], sizes = [2, 32], strides = [1, 1]} : vector<2x128xf32> to vector<2x32xf32>
    %38 = arith.negf %37 : vector<2x32xf32>
    %39 = math.exp %38 : vector<2x32xf32>
    %cst_23 = arith.constant 1.000000e+00 : f32
    %40 = vector.broadcast %cst_23 : f32 to vector<2x32xf32>
    %41 = arith.addf %40, %39 : vector<2x32xf32>
    %42 = arith.divf %40, %41 : vector<2x32xf32>
    %43 = arith.mulf %34, %14 : vector<2x32xf32>
    %44 = arith.mulf %28, %36 : vector<2x32xf32>
    %45 = arith.addf %43, %44 : vector<2x32xf32>
    %46 = math.tanh %45 : vector<2x32xf32>
    %47 = arith.mulf %42, %46 : vector<2x32xf32>
    %cst_24 = arith.constant 5.000000e-01 : f32
    %48 = vector.broadcast %cst_24 : f32 to vector<2x1xf32>
    %49 = arith.cmpf ogt, %20, %48 : vector<2x1xf32>
    %50 = vector.shape_cast %49 : vector<2x1xi1> to vector<2x1xi1>
    %51 = vector.broadcast %50 : vector<2x1xi1> to vector<2x32xi1>
    %52 = arith.select %51, %47, %13 : vector<2x32xi1>, vector<2x32xf32>
    %53 = vector.shape_cast %49 : vector<2x1xi1> to vector<2x1xi1>
    %54 = vector.broadcast %53 : vector<2x1xi1> to vector<2x32xi1>
    %55 = arith.select %54, %45, %14 : vector<2x32xi1>, vector<2x32xf32>
    %56 = arith.mulf %52, %11 : vector<2x32xf32>
    %cst_25 = arith.constant dense<0.000000e+00> : vector<2xf32>
    %57 = vector.multi_reduction <add>, %56, %cst_25 [1] : vector<2x32xf32> to vector<2xf32>
    %58 = vector.shape_cast %57 : vector<2xf32> to vector<2x1xf32>
    %59 = vector.broadcast %12 : vector<1x1xf32> to vector<2x1xf32>
    %60 = arith.addf %58, %59 : vector<2x1xf32>
    %61 = arith.negf %60 : vector<2x1xf32>
    %62 = math.exp %61 : vector<2x1xf32>
    %cst_26 = arith.constant 1.000000e+00 : f32
    %63 = vector.broadcast %cst_26 : f32 to vector<2x1xf32>
    %64 = arith.addf %63, %62 : vector<2x1xf32>
    %65 = arith.divf %63, %64 : vector<2x1xf32>
    %66 = arith.index_cast %c0_i32 : i32 to index
    %c0_27 = arith.constant 0 : index
    %c0_28 = arith.constant 0 : index
    %67 = vector.load %arg7[%66, %c0_27, %c0_28] : memref<8x2x1xf32, #tpu.memory_space<vmem>>, vector<1x2x1xf32>
    %68 = vector.shape_cast %67 : vector<1x2x1xf32> to vector<2x1xf32>
    %69 = vector.shape_cast %65 : vector<2x1xf32> to vector<1x2x1xf32>
    tpu.vector_store %arg7[%66, %c0_27, %c0_28], %69 {strides = array<i32>} : memref<8x2x1xf32, #tpu.memory_space<vmem>>, vector<1x2x1xf32>,
    %c1_i32 = arith.constant 1 : i32
    %70 = arith.index_cast %c1_i32 : i32 to index
    %c0_29 = arith.constant 0 : index
    %c0_30 = arith.constant 0 : index
    %71 = vector.load %arg8[%70, %c0_29, %c0_30] : memref<8x2x128xf32, #tpu.memory_space<vmem>>, vector<1x2x128xf32>
    %72 = vector.shape_cast %71 : vector<1x2x128xf32> to vector<2x128xf32>
    %73 = arith.index_cast %c1_i32 : i32 to index
    %c0_31 = arith.constant 0 : index
    %c0_32 = arith.constant 0 : index
    %74 = vector.load %arg1[%73, %c0_31, %c0_32] : memref<8x2x1xf32, #tpu.memory_space<vmem>>, vector<1x2x1xf32>
    %75 = vector.shape_cast %74 : vector<1x2x1xf32> to vector<2x1xf32>
    %cst_33 = arith.constant dense<0.000000e+00> : vector<2x128xf32>
    %76 = tpu.matmul %52, %8, %cst_33 {dimension_numbers = #tpu.dot_dimension_numbers<[1], [0], [0], [1], [0, 0, 1, 1], [], []>} : vector<2x32xf32>, vector<32x128xf32>, vector<2x128xf32> -> vector<2x128xf32>
    %77 = arith.addf %72, %76 : vector<2x128xf32>
    %78 = vector.extract_strided_slice %77 {offsets = [0, 0], sizes = [2, 32], strides = [1, 1]} : vector<2x128xf32> to vector<2x32xf32>
    %79 = arith.negf %78 : vector<2x32xf32>
    %80 = math.exp %79 : vector<2x32xf32>
    %cst_34 = arith.constant 1.000000e+00 : f32
    %81 = vector.broadcast %cst_34 : f32 to vector<2x32xf32>
    %82 = arith.addf %81, %80 : vector<2x32xf32>
    %83 = arith.divf %81, %82 : vector<2x32xf32>
    %84 = vector.extract_strided_slice %77 {offsets = [0, 32], sizes = [2, 32], strides = [1, 1]} : vector<2x128xf32> to vector<2x32xf32>
    %85 = arith.negf %84 : vector<2x32xf32>
    %86 = math.exp %85 : vector<2x32xf32>
    %cst_35 = arith.constant 1.000000e+00 : f32
    %87 = vector.broadcast %cst_35 : f32 to vector<2x32xf32>
    %88 = arith.addf %87, %86 : vector<2x32xf32>
    %89 = arith.divf %87, %88 : vector<2x32xf32>
    %90 = vector.extract_strided_slice %77 {offsets = [0, 64], sizes = [2, 32], strides = [1, 1]} : vector<2x128xf32> to vector<2x32xf32>
    %91 = math.tanh %90 : vector<2x32xf32>
    %92 = vector.extract_strided_slice %77 {offsets = [0, 96], sizes = [2, 32], strides = [1, 1]} : vector<2x128xf32> to vector<2x32xf32>
    %93 = arith.negf %92 : vector<2x32xf32>
    %94 = math.exp %93 : vector<2x32xf32>
    %cst_36 = arith.constant 1.000000e+00 : f32
    %95 = vector.broadcast %cst_36 : f32 to vector<2x32xf32>
    %96 = arith.addf %95, %94 : vector<2x32xf32>
    %97 = arith.divf %95, %96 : vector<2x32xf32>
    %98 = arith.mulf %89, %55 : vector<2x32xf32>
    %99 = arith.mulf %83, %91 : vector<2x32xf32>
    %100 = arith.addf %98, %99 : vector<2x32xf32>
    %101 = math.tanh %100 : vector<2x32xf32>
    %102 = arith.mulf %97, %101 : vector<2x32xf32>
    %cst_37 = arith.constant 5.000000e-01 : f32
    %103 = vector.broadcast %cst_37 : f32 to vector<2x1xf32>
    %104 = arith.cmpf ogt, %75, %103 : vector<2x1xf32>
    %105 = vector.shape_cast %104 : vector<2x1xi1> to vector<2x1xi1>
    %106 = vector.broadcast %105 : vector<2x1xi1> to vector<2x32xi1>
    %107 = arith.select %106, %102, %52 : vector<2x32xi1>, vector<2x32xf32>
    %108 = vector.shape_cast %104 : vector<2x1xi1> to vector<2x1xi1>
    %109 = vector.broadcast %108 : vector<2x1xi1> to vector<2x32xi1>
    %110 = arith.select %109, %100, %55 : vector<2x32xi1>, vector<2x32xf32>
    %111 = arith.mulf %107, %11 : vector<2x32xf32>
    %cst_38 = arith.constant dense<0.000000e+00> : vector<2xf32>
    %112 = vector.multi_reduction <add>, %111, %cst_38 [1] : vector<2x32xf32> to vector<2xf32>
    %113 = vector.shape_cast %112 : vector<2xf32> to vector<2x1xf32>
    %114 = vector.broadcast %12 : vector<1x1xf32> to vector<2x1xf32>
    %115 = arith.addf %113, %114 : vector<2x1xf32>
    %116 = arith.negf %115 : vector<2x1xf32>
    %117 = math.exp %116 : vector<2x1xf32>
    %cst_39 = arith.constant 1.000000e+00 : f32
    %118 = vector.broadcast %cst_39 : f32 to vector<2x1xf32>
    %119 = arith.addf %118, %117 : vector<2x1xf32>
    %120 = arith.divf %118, %119 : vector<2x1xf32>
    %121 = arith.index_cast %c1_i32 : i32 to index
    %c0_40 = arith.constant 0 : index
    %c0_41 = arith.constant 0 : index
    %122 = vector.load %arg7[%121, %c0_40, %c0_41] : memref<8x2x1xf32, #tpu.memory_space<vmem>>, vector<1x2x1xf32>
    %123 = vector.shape_cast %122 : vector<1x2x1xf32> to vector<2x1xf32>
    %124 = vector.shape_cast %120 : vector<2x1xf32> to vector<1x2x1xf32>
    tpu.vector_store %arg7[%121, %c0_40, %c0_41], %124 {strides = array<i32>} : memref<8x2x1xf32, #tpu.memory_space<vmem>>, vector<1x2x1xf32>,
    %c2_i32 = arith.constant 2 : i32
    %125 = arith.index_cast %c2_i32 : i32 to index
    %c0_42 = arith.constant 0 : index
    %c0_43 = arith.constant 0 : index
    %126 = vector.load %arg8[%125, %c0_42, %c0_43] : memref<8x2x128xf32, #tpu.memory_space<vmem>>, vector<1x2x128xf32>
    %127 = vector.shape_cast %126 : vector<1x2x128xf32> to vector<2x128xf32>
    %128 = arith.index_cast %c2_i32 : i32 to index
    %c0_44 = arith.constant 0 : index
    %c0_45 = arith.constant 0 : index
    %129 = vector.load %arg1[%128, %c0_44, %c0_45] : memref<8x2x1xf32, #tpu.memory_space<vmem>>, vector<1x2x1xf32>
    %130 = vector.shape_cast %129 : vector<1x2x1xf32> to vector<2x1xf32>
    %cst_46 = arith.constant dense<0.000000e+00> : vector<2x128xf32>
    %131 = tpu.matmul %107, %8, %cst_46 {dimension_numbers = #tpu.dot_dimension_numbers<[1], [0], [0], [1], [0, 0, 1, 1], [], []>} : vector<2x32xf32>, vector<32x128xf32>, vector<2x128xf32> -> vector<2x128xf32>
    %132 = arith.addf %127, %131 : vector<2x128xf32>
    %133 = vector.extract_strided_slice %132 {offsets = [0, 0], sizes = [2, 32], strides = [1, 1]} : vector<2x128xf32> to vector<2x32xf32>
    %134 = arith.negf %133 : vector<2x32xf32>
    %135 = math.exp %134 : vector<2x32xf32>
    %cst_47 = arith.constant 1.000000e+00 : f32
    %136 = vector.broadcast %cst_47 : f32 to vector<2x32xf32>
    %137 = arith.addf %136, %135 : vector<2x32xf32>
    %138 = arith.divf %136, %137 : vector<2x32xf32>
    %139 = vector.extract_strided_slice %132 {offsets = [0, 32], sizes = [2, 32], strides = [1, 1]} : vector<2x128xf32> to vector<2x32xf32>
    %140 = arith.negf %139 : vector<2x32xf32>
    %141 = math.exp %140 : vector<2x32xf32>
    %cst_48 = arith.constant 1.000000e+00 : f32
    %142 = vector.broadcast %cst_48 : f32 to vector<2x32xf32>
    %143 = arith.addf %142, %141 : vector<2x32xf32>
    %144 = arith.divf %142, %143 : vector<2x32xf32>
    %145 = vector.extract_strided_slice %132 {offsets = [0, 64], sizes = [2, 32], strides = [1, 1]} : vector<2x128xf32> to vector<2x32xf32>
    %146 = math.tanh %145 : vector<2x32xf32>
    %147 = vector.extract_strided_slice %132 {offsets = [0, 96], sizes = [2, 32], strides = [1, 1]} : vector<2x128xf32> to vector<2x32xf32>
    %148 = arith.negf %147 : vector<2x32xf32>
    %149 = math.exp %148 : vector<2x32xf32>
    %cst_49 = arith.constant 1.000000e+00 : f32
    %150 = vector.broadcast %cst_49 : f32 to vector<2x32xf32>
    %151 = arith.addf %150, %149 : vector<2x32xf32>
    %152 = arith.divf %150, %151 : vector<2x32xf32>
    %153 = arith.mulf %144, %110 : vector<2x32xf32>
    %154 = arith.mulf %138, %146 : vector<2x32xf32>
    %155 = arith.addf %153, %154 : vector<2x32xf32>
    %156 = math.tanh %155 : vector<2x32xf32>
    %157 = arith.mulf %152, %156 : vector<2x32xf32>
    %cst_50 = arith.constant 5.000000e-01 : f32
    %158 = vector.broadcast %cst_50 : f32 to vector<2x1xf32>
    %159 = arith.cmpf ogt, %130, %158 : vector<2x1xf32>
    %160 = vector.shape_cast %159 : vector<2x1xi1> to vector<2x1xi1>
    %161 = vector.broadcast %160 : vector<2x1xi1> to vector<2x32xi1>
    %162 = arith.select %161, %157, %107 : vector<2x32xi1>, vector<2x32xf32>
    %163 = vector.shape_cast %159 : vector<2x1xi1> to vector<2x1xi1>
    %164 = vector.broadcast %163 : vector<2x1xi1> to vector<2x32xi1>
    %165 = arith.select %164, %155, %110 : vector<2x32xi1>, vector<2x32xf32>
    %166 = arith.mulf %162, %11 : vector<2x32xf32>
    %cst_51 = arith.constant dense<0.000000e+00> : vector<2xf32>
    %167 = vector.multi_reduction <add>, %166, %cst_51 [1] : vector<2x32xf32> to vector<2xf32>
    %168 = vector.shape_cast %167 : vector<2xf32> to vector<2x1xf32>
    %169 = vector.broadcast %12 : vector<1x1xf32> to vector<2x1xf32>
    %170 = arith.addf %168, %169 : vector<2x1xf32>
    %171 = arith.negf %170 : vector<2x1xf32>
    %172 = math.exp %171 : vector<2x1xf32>
    %cst_52 = arith.constant 1.000000e+00 : f32
    %173 = vector.broadcast %cst_52 : f32 to vector<2x1xf32>
    %174 = arith.addf %173, %172 : vector<2x1xf32>
    %175 = arith.divf %173, %174 : vector<2x1xf32>
    %176 = arith.index_cast %c2_i32 : i32 to index
    %c0_53 = arith.constant 0 : index
    %c0_54 = arith.constant 0 : index
    %177 = vector.load %arg7[%176, %c0_53, %c0_54] : memref<8x2x1xf32, #tpu.memory_space<vmem>>, vector<1x2x1xf32>
    %178 = vector.shape_cast %177 : vector<1x2x1xf32> to vector<2x1xf32>
    %179 = vector.shape_cast %175 : vector<2x1xf32> to vector<1x2x1xf32>
    tpu.vector_store %arg7[%176, %c0_53, %c0_54], %179 {strides = array<i32>} : memref<8x2x1xf32, #tpu.memory_space<vmem>>, vector<1x2x1xf32>,
    %c3_i32 = arith.constant 3 : i32
    %180 = arith.index_cast %c3_i32 : i32 to index
    %c0_55 = arith.constant 0 : index
    %c0_56 = arith.constant 0 : index
    %181 = vector.load %arg8[%180, %c0_55, %c0_56] : memref<8x2x128xf32, #tpu.memory_space<vmem>>, vector<1x2x128xf32>
    %182 = vector.shape_cast %181 : vector<1x2x128xf32> to vector<2x128xf32>
    %183 = arith.index_cast %c3_i32 : i32 to index
    %c0_57 = arith.constant 0 : index
    %c0_58 = arith.constant 0 : index
    %184 = vector.load %arg1[%183, %c0_57, %c0_58] : memref<8x2x1xf32, #tpu.memory_space<vmem>>, vector<1x2x1xf32>
    %185 = vector.shape_cast %184 : vector<1x2x1xf32> to vector<2x1xf32>
    %cst_59 = arith.constant dense<0.000000e+00> : vector<2x128xf32>
    %186 = tpu.matmul %162, %8, %cst_59 {dimension_numbers = #tpu.dot_dimension_numbers<[1], [0], [0], [1], [0, 0, 1, 1], [], []>} : vector<2x32xf32>, vector<32x128xf32>, vector<2x128xf32> -> vector<2x128xf32>
    %187 = arith.addf %182, %186 : vector<2x128xf32>
    %188 = vector.extract_strided_slice %187 {offsets = [0, 0], sizes = [2, 32], strides = [1, 1]} : vector<2x128xf32> to vector<2x32xf32>
    %189 = arith.negf %188 : vector<2x32xf32>
    %190 = math.exp %189 : vector<2x32xf32>
    %cst_60 = arith.constant 1.000000e+00 : f32
    %191 = vector.broadcast %cst_60 : f32 to vector<2x32xf32>
    %192 = arith.addf %191, %190 : vector<2x32xf32>
    %193 = arith.divf %191, %192 : vector<2x32xf32>
    %194 = vector.extract_strided_slice %187 {offsets = [0, 32], sizes = [2, 32], strides = [1, 1]} : vector<2x128xf32> to vector<2x32xf32>
    %195 = arith.negf %194 : vector<2x32xf32>
    %196 = math.exp %195 : vector<2x32xf32>
    %cst_61 = arith.constant 1.000000e+00 : f32
    %197 = vector.broadcast %cst_61 : f32 to vector<2x32xf32>
    %198 = arith.addf %197, %196 : vector<2x32xf32>
    %199 = arith.divf %197, %198 : vector<2x32xf32>
    %200 = vector.extract_strided_slice %187 {offsets = [0, 64], sizes = [2, 32], strides = [1, 1]} : vector<2x128xf32> to vector<2x32xf32>
    %201 = math.tanh %200 : vector<2x32xf32>
    %202 = vector.extract_strided_slice %187 {offsets = [0, 96], sizes = [2, 32], strides = [1, 1]} : vector<2x128xf32> to vector<2x32xf32>
    %203 = arith.negf %202 : vector<2x32xf32>
    %204 = math.exp %203 : vector<2x32xf32>
    %cst_62 = arith.constant 1.000000e+00 : f32
    %205 = vector.broadcast %cst_62 : f32 to vector<2x32xf32>
    %206 = arith.addf %205, %204 : vector<2x32xf32>
    %207 = arith.divf %205, %206 : vector<2x32xf32>
    %208 = arith.mulf %199, %165 : vector<2x32xf32>
    %209 = arith.mulf %193, %201 : vector<2x32xf32>
    %210 = arith.addf %208, %209 : vector<2x32xf32>
    %211 = math.tanh %210 : vector<2x32xf32>
    %212 = arith.mulf %207, %211 : vector<2x32xf32>
    %cst_63 = arith.constant 5.000000e-01 : f32
    %213 = vector.broadcast %cst_63 : f32 to vector<2x1xf32>
    %214 = arith.cmpf ogt, %185, %213 : vector<2x1xf32>
    %215 = vector.shape_cast %214 : vector<2x1xi1> to vector<2x1xi1>
    %216 = vector.broadcast %215 : vector<2x1xi1> to vector<2x32xi1>
    %217 = arith.select %216, %212, %162 : vector<2x32xi1>, vector<2x32xf32>
    %218 = vector.shape_cast %214 : vector<2x1xi1> to vector<2x1xi1>
    %219 = vector.broadcast %218 : vector<2x1xi1> to vector<2x32xi1>
    %220 = arith.select %219, %210, %165 : vector<2x32xi1>, vector<2x32xf32>
    %221 = arith.mulf %217, %11 : vector<2x32xf32>
    %cst_64 = arith.constant dense<0.000000e+00> : vector<2xf32>
    %222 = vector.multi_reduction <add>, %221, %cst_64 [1] : vector<2x32xf32> to vector<2xf32>
    %223 = vector.shape_cast %222 : vector<2xf32> to vector<2x1xf32>
    %224 = vector.broadcast %12 : vector<1x1xf32> to vector<2x1xf32>
    %225 = arith.addf %223, %224 : vector<2x1xf32>
    %226 = arith.negf %225 : vector<2x1xf32>
    %227 = math.exp %226 : vector<2x1xf32>
    %cst_65 = arith.constant 1.000000e+00 : f32
    %228 = vector.broadcast %cst_65 : f32 to vector<2x1xf32>
    %229 = arith.addf %228, %227 : vector<2x1xf32>
    %230 = arith.divf %228, %229 : vector<2x1xf32>
    %231 = arith.index_cast %c3_i32 : i32 to index
    %c0_66 = arith.constant 0 : index
    %c0_67 = arith.constant 0 : index
    %232 = vector.load %arg7[%231, %c0_66, %c0_67] : memref<8x2x1xf32, #tpu.memory_space<vmem>>, vector<1x2x1xf32>
    %233 = vector.shape_cast %232 : vector<1x2x1xf32> to vector<2x1xf32>
    %234 = vector.shape_cast %230 : vector<2x1xf32> to vector<1x2x1xf32>
    tpu.vector_store %arg7[%231, %c0_66, %c0_67], %234 {strides = array<i32>} : memref<8x2x1xf32, #tpu.memory_space<vmem>>, vector<1x2x1xf32>,
    %c4_i32 = arith.constant 4 : i32
    %235 = arith.index_cast %c4_i32 : i32 to index
    %c0_68 = arith.constant 0 : index
    %c0_69 = arith.constant 0 : index
    %236 = vector.load %arg8[%235, %c0_68, %c0_69] : memref<8x2x128xf32, #tpu.memory_space<vmem>>, vector<1x2x128xf32>
    %237 = vector.shape_cast %236 : vector<1x2x128xf32> to vector<2x128xf32>
    %238 = arith.index_cast %c4_i32 : i32 to index
    %c0_70 = arith.constant 0 : index
    %c0_71 = arith.constant 0 : index
    %239 = vector.load %arg1[%238, %c0_70, %c0_71] : memref<8x2x1xf32, #tpu.memory_space<vmem>>, vector<1x2x1xf32>
    %240 = vector.shape_cast %239 : vector<1x2x1xf32> to vector<2x1xf32>
    %cst_72 = arith.constant dense<0.000000e+00> : vector<2x128xf32>
    %241 = tpu.matmul %217, %8, %cst_72 {dimension_numbers = #tpu.dot_dimension_numbers<[1], [0], [0], [1], [0, 0, 1, 1], [], []>} : vector<2x32xf32>, vector<32x128xf32>, vector<2x128xf32> -> vector<2x128xf32>
    %242 = arith.addf %237, %241 : vector<2x128xf32>
    %243 = vector.extract_strided_slice %242 {offsets = [0, 0], sizes = [2, 32], strides = [1, 1]} : vector<2x128xf32> to vector<2x32xf32>
    %244 = arith.negf %243 : vector<2x32xf32>
    %245 = math.exp %244 : vector<2x32xf32>
    %cst_73 = arith.constant 1.000000e+00 : f32
    %246 = vector.broadcast %cst_73 : f32 to vector<2x32xf32>
    %247 = arith.addf %246, %245 : vector<2x32xf32>
    %248 = arith.divf %246, %247 : vector<2x32xf32>
    %249 = vector.extract_strided_slice %242 {offsets = [0, 32], sizes = [2, 32], strides = [1, 1]} : vector<2x128xf32> to vector<2x32xf32>
    %250 = arith.negf %249 : vector<2x32xf32>
    %251 = math.exp %250 : vector<2x32xf32>
    %cst_74 = arith.constant 1.000000e+00 : f32
    %252 = vector.broadcast %cst_74 : f32 to vector<2x32xf32>
    %253 = arith.addf %252, %251 : vector<2x32xf32>
    %254 = arith.divf %252, %253 : vector<2x32xf32>
    %255 = vector.extract_strided_slice %242 {offsets = [0, 64], sizes = [2, 32], strides = [1, 1]} : vector<2x128xf32> to vector<2x32xf32>
    %256 = math.tanh %255 : vector<2x32xf32>
    %257 = vector.extract_strided_slice %242 {offsets = [0, 96], sizes = [2, 32], strides = [1, 1]} : vector<2x128xf32> to vector<2x32xf32>
    %258 = arith.negf %257 : vector<2x32xf32>
    %259 = math.exp %258 : vector<2x32xf32>
    %cst_75 = arith.constant 1.000000e+00 : f32
    %260 = vector.broadcast %cst_75 : f32 to vector<2x32xf32>
    %261 = arith.addf %260, %259 : vector<2x32xf32>
    %262 = arith.divf %260, %261 : vector<2x32xf32>
    %263 = arith.mulf %254, %220 : vector<2x32xf32>
    %264 = arith.mulf %248, %256 : vector<2x32xf32>
    %265 = arith.addf %263, %264 : vector<2x32xf32>
    %266 = math.tanh %265 : vector<2x32xf32>
    %267 = arith.mulf %262, %266 : vector<2x32xf32>
    %cst_76 = arith.constant 5.000000e-01 : f32
    %268 = vector.broadcast %cst_76 : f32 to vector<2x1xf32>
    %269 = arith.cmpf ogt, %240, %268 : vector<2x1xf32>
    %270 = vector.shape_cast %269 : vector<2x1xi1> to vector<2x1xi1>
    %271 = vector.broadcast %270 : vector<2x1xi1> to vector<2x32xi1>
    %272 = arith.select %271, %267, %217 : vector<2x32xi1>, vector<2x32xf32>
    %273 = vector.shape_cast %269 : vector<2x1xi1> to vector<2x1xi1>
    %274 = vector.broadcast %273 : vector<2x1xi1> to vector<2x32xi1>
    %275 = arith.select %274, %265, %220 : vector<2x32xi1>, vector<2x32xf32>
    %276 = arith.mulf %272, %11 : vector<2x32xf32>
    %cst_77 = arith.constant dense<0.000000e+00> : vector<2xf32>
    %277 = vector.multi_reduction <add>, %276, %cst_77 [1] : vector<2x32xf32> to vector<2xf32>
    %278 = vector.shape_cast %277 : vector<2xf32> to vector<2x1xf32>
    %279 = vector.broadcast %12 : vector<1x1xf32> to vector<2x1xf32>
    %280 = arith.addf %278, %279 : vector<2x1xf32>
    %281 = arith.negf %280 : vector<2x1xf32>
    %282 = math.exp %281 : vector<2x1xf32>
    %cst_78 = arith.constant 1.000000e+00 : f32
    %283 = vector.broadcast %cst_78 : f32 to vector<2x1xf32>
    %284 = arith.addf %283, %282 : vector<2x1xf32>
    %285 = arith.divf %283, %284 : vector<2x1xf32>
    %286 = arith.index_cast %c4_i32 : i32 to index
    %c0_79 = arith.constant 0 : index
    %c0_80 = arith.constant 0 : index
    %287 = vector.load %arg7[%286, %c0_79, %c0_80] : memref<8x2x1xf32, #tpu.memory_space<vmem>>, vector<1x2x1xf32>
    %288 = vector.shape_cast %287 : vector<1x2x1xf32> to vector<2x1xf32>
    %289 = vector.shape_cast %285 : vector<2x1xf32> to vector<1x2x1xf32>
    tpu.vector_store %arg7[%286, %c0_79, %c0_80], %289 {strides = array<i32>} : memref<8x2x1xf32, #tpu.memory_space<vmem>>, vector<1x2x1xf32>,
    %c5_i32 = arith.constant 5 : i32
    %290 = arith.index_cast %c5_i32 : i32 to index
    %c0_81 = arith.constant 0 : index
    %c0_82 = arith.constant 0 : index
    %291 = vector.load %arg8[%290, %c0_81, %c0_82] : memref<8x2x128xf32, #tpu.memory_space<vmem>>, vector<1x2x128xf32>
    %292 = vector.shape_cast %291 : vector<1x2x128xf32> to vector<2x128xf32>
    %293 = arith.index_cast %c5_i32 : i32 to index
    %c0_83 = arith.constant 0 : index
    %c0_84 = arith.constant 0 : index
    %294 = vector.load %arg1[%293, %c0_83, %c0_84] : memref<8x2x1xf32, #tpu.memory_space<vmem>>, vector<1x2x1xf32>
    %295 = vector.shape_cast %294 : vector<1x2x1xf32> to vector<2x1xf32>
    %cst_85 = arith.constant dense<0.000000e+00> : vector<2x128xf32>
    %296 = tpu.matmul %272, %8, %cst_85 {dimension_numbers = #tpu.dot_dimension_numbers<[1], [0], [0], [1], [0, 0, 1, 1], [], []>} : vector<2x32xf32>, vector<32x128xf32>, vector<2x128xf32> -> vector<2x128xf32>
    %297 = arith.addf %292, %296 : vector<2x128xf32>
    %298 = vector.extract_strided_slice %297 {offsets = [0, 0], sizes = [2, 32], strides = [1, 1]} : vector<2x128xf32> to vector<2x32xf32>
    %299 = arith.negf %298 : vector<2x32xf32>
    %300 = math.exp %299 : vector<2x32xf32>
    %cst_86 = arith.constant 1.000000e+00 : f32
    %301 = vector.broadcast %cst_86 : f32 to vector<2x32xf32>
    %302 = arith.addf %301, %300 : vector<2x32xf32>
    %303 = arith.divf %301, %302 : vector<2x32xf32>
    %304 = vector.extract_strided_slice %297 {offsets = [0, 32], sizes = [2, 32], strides = [1, 1]} : vector<2x128xf32> to vector<2x32xf32>
    %305 = arith.negf %304 : vector<2x32xf32>
    %306 = math.exp %305 : vector<2x32xf32>
    %cst_87 = arith.constant 1.000000e+00 : f32
    %307 = vector.broadcast %cst_87 : f32 to vector<2x32xf32>
    %308 = arith.addf %307, %306 : vector<2x32xf32>
    %309 = arith.divf %307, %308 : vector<2x32xf32>
    %310 = vector.extract_strided_slice %297 {offsets = [0, 64], sizes = [2, 32], strides = [1, 1]} : vector<2x128xf32> to vector<2x32xf32>
    %311 = math.tanh %310 : vector<2x32xf32>
    %312 = vector.extract_strided_slice %297 {offsets = [0, 96], sizes = [2, 32], strides = [1, 1]} : vector<2x128xf32> to vector<2x32xf32>
    %313 = arith.negf %312 : vector<2x32xf32>
    %314 = math.exp %313 : vector<2x32xf32>
    %cst_88 = arith.constant 1.000000e+00 : f32
    %315 = vector.broadcast %cst_88 : f32 to vector<2x32xf32>
    %316 = arith.addf %315, %314 : vector<2x32xf32>
    %317 = arith.divf %315, %316 : vector<2x32xf32>
    %318 = arith.mulf %309, %275 : vector<2x32xf32>
    %319 = arith.mulf %303, %311 : vector<2x32xf32>
    %320 = arith.addf %318, %319 : vector<2x32xf32>
    %321 = math.tanh %320 : vector<2x32xf32>
    %322 = arith.mulf %317, %321 : vector<2x32xf32>
    %cst_89 = arith.constant 5.000000e-01 : f32
    %323 = vector.broadcast %cst_89 : f32 to vector<2x1xf32>
    %324 = arith.cmpf ogt, %295, %323 : vector<2x1xf32>
    %325 = vector.shape_cast %324 : vector<2x1xi1> to vector<2x1xi1>
    %326 = vector.broadcast %325 : vector<2x1xi1> to vector<2x32xi1>
    %327 = arith.select %326, %322, %272 : vector<2x32xi1>, vector<2x32xf32>
    %328 = vector.shape_cast %324 : vector<2x1xi1> to vector<2x1xi1>
    %329 = vector.broadcast %328 : vector<2x1xi1> to vector<2x32xi1>
    %330 = arith.select %329, %320, %275 : vector<2x32xi1>, vector<2x32xf32>
    %331 = arith.mulf %327, %11 : vector<2x32xf32>
    %cst_90 = arith.constant dense<0.000000e+00> : vector<2xf32>
    %332 = vector.multi_reduction <add>, %331, %cst_90 [1] : vector<2x32xf32> to vector<2xf32>
    %333 = vector.shape_cast %332 : vector<2xf32> to vector<2x1xf32>
    %334 = vector.broadcast %12 : vector<1x1xf32> to vector<2x1xf32>
    %335 = arith.addf %333, %334 : vector<2x1xf32>
    %336 = arith.negf %335 : vector<2x1xf32>
    %337 = math.exp %336 : vector<2x1xf32>
    %cst_91 = arith.constant 1.000000e+00 : f32
    %338 = vector.broadcast %cst_91 : f32 to vector<2x1xf32>
    %339 = arith.addf %338, %337 : vector<2x1xf32>
    %340 = arith.divf %338, %339 : vector<2x1xf32>
    %341 = arith.index_cast %c5_i32 : i32 to index
    %c0_92 = arith.constant 0 : index
    %c0_93 = arith.constant 0 : index
    %342 = vector.load %arg7[%341, %c0_92, %c0_93] : memref<8x2x1xf32, #tpu.memory_space<vmem>>, vector<1x2x1xf32>
    %343 = vector.shape_cast %342 : vector<1x2x1xf32> to vector<2x1xf32>
    %344 = vector.shape_cast %340 : vector<2x1xf32> to vector<1x2x1xf32>
    tpu.vector_store %arg7[%341, %c0_92, %c0_93], %344 {strides = array<i32>} : memref<8x2x1xf32, #tpu.memory_space<vmem>>, vector<1x2x1xf32>,
    %c6_i32 = arith.constant 6 : i32
    %345 = arith.index_cast %c6_i32 : i32 to index
    %c0_94 = arith.constant 0 : index
    %c0_95 = arith.constant 0 : index
    %346 = vector.load %arg8[%345, %c0_94, %c0_95] : memref<8x2x128xf32, #tpu.memory_space<vmem>>, vector<1x2x128xf32>
    %347 = vector.shape_cast %346 : vector<1x2x128xf32> to vector<2x128xf32>
    %348 = arith.index_cast %c6_i32 : i32 to index
    %c0_96 = arith.constant 0 : index
    %c0_97 = arith.constant 0 : index
    %349 = vector.load %arg1[%348, %c0_96, %c0_97] : memref<8x2x1xf32, #tpu.memory_space<vmem>>, vector<1x2x1xf32>
    %350 = vector.shape_cast %349 : vector<1x2x1xf32> to vector<2x1xf32>
    %cst_98 = arith.constant dense<0.000000e+00> : vector<2x128xf32>
    %351 = tpu.matmul %327, %8, %cst_98 {dimension_numbers = #tpu.dot_dimension_numbers<[1], [0], [0], [1], [0, 0, 1, 1], [], []>} : vector<2x32xf32>, vector<32x128xf32>, vector<2x128xf32> -> vector<2x128xf32>
    %352 = arith.addf %347, %351 : vector<2x128xf32>
    %353 = vector.extract_strided_slice %352 {offsets = [0, 0], sizes = [2, 32], strides = [1, 1]} : vector<2x128xf32> to vector<2x32xf32>
    %354 = arith.negf %353 : vector<2x32xf32>
    %355 = math.exp %354 : vector<2x32xf32>
    %cst_99 = arith.constant 1.000000e+00 : f32
    %356 = vector.broadcast %cst_99 : f32 to vector<2x32xf32>
    %357 = arith.addf %356, %355 : vector<2x32xf32>
    %358 = arith.divf %356, %357 : vector<2x32xf32>
    %359 = vector.extract_strided_slice %352 {offsets = [0, 32], sizes = [2, 32], strides = [1, 1]} : vector<2x128xf32> to vector<2x32xf32>
    %360 = arith.negf %359 : vector<2x32xf32>
    %361 = math.exp %360 : vector<2x32xf32>
    %cst_100 = arith.constant 1.000000e+00 : f32
    %362 = vector.broadcast %cst_100 : f32 to vector<2x32xf32>
    %363 = arith.addf %362, %361 : vector<2x32xf32>
    %364 = arith.divf %362, %363 : vector<2x32xf32>
    %365 = vector.extract_strided_slice %352 {offsets = [0, 64], sizes = [2, 32], strides = [1, 1]} : vector<2x128xf32> to vector<2x32xf32>
    %366 = math.tanh %365 : vector<2x32xf32>
    %367 = vector.extract_strided_slice %352 {offsets = [0, 96], sizes = [2, 32], strides = [1, 1]} : vector<2x128xf32> to vector<2x32xf32>
    %368 = arith.negf %367 : vector<2x32xf32>
    %369 = math.exp %368 : vector<2x32xf32>
    %cst_101 = arith.constant 1.000000e+00 : f32
    %370 = vector.broadcast %cst_101 : f32 to vector<2x32xf32>
    %371 = arith.addf %370, %369 : vector<2x32xf32>
    %372 = arith.divf %370, %371 : vector<2x32xf32>
    %373 = arith.mulf %364, %330 : vector<2x32xf32>
    %374 = arith.mulf %358, %366 : vector<2x32xf32>
    %375 = arith.addf %373, %374 : vector<2x32xf32>
    %376 = math.tanh %375 : vector<2x32xf32>
    %377 = arith.mulf %372, %376 : vector<2x32xf32>
    %cst_102 = arith.constant 5.000000e-01 : f32
    %378 = vector.broadcast %cst_102 : f32 to vector<2x1xf32>
    %379 = arith.cmpf ogt, %350, %378 : vector<2x1xf32>
    %380 = vector.shape_cast %379 : vector<2x1xi1> to vector<2x1xi1>
    %381 = vector.broadcast %380 : vector<2x1xi1> to vector<2x32xi1>
    %382 = arith.select %381, %377, %327 : vector<2x32xi1>, vector<2x32xf32>
    %383 = vector.shape_cast %379 : vector<2x1xi1> to vector<2x1xi1>
    %384 = vector.broadcast %383 : vector<2x1xi1> to vector<2x32xi1>
    %385 = arith.select %384, %375, %330 : vector<2x32xi1>, vector<2x32xf32>
    %386 = arith.mulf %382, %11 : vector<2x32xf32>
    %cst_103 = arith.constant dense<0.000000e+00> : vector<2xf32>
    %387 = vector.multi_reduction <add>, %386, %cst_103 [1] : vector<2x32xf32> to vector<2xf32>
    %388 = vector.shape_cast %387 : vector<2xf32> to vector<2x1xf32>
    %389 = vector.broadcast %12 : vector<1x1xf32> to vector<2x1xf32>
    %390 = arith.addf %388, %389 : vector<2x1xf32>
    %391 = arith.negf %390 : vector<2x1xf32>
    %392 = math.exp %391 : vector<2x1xf32>
    %cst_104 = arith.constant 1.000000e+00 : f32
    %393 = vector.broadcast %cst_104 : f32 to vector<2x1xf32>
    %394 = arith.addf %393, %392 : vector<2x1xf32>
    %395 = arith.divf %393, %394 : vector<2x1xf32>
    %396 = arith.index_cast %c6_i32 : i32 to index
    %c0_105 = arith.constant 0 : index
    %c0_106 = arith.constant 0 : index
    %397 = vector.load %arg7[%396, %c0_105, %c0_106] : memref<8x2x1xf32, #tpu.memory_space<vmem>>, vector<1x2x1xf32>
    %398 = vector.shape_cast %397 : vector<1x2x1xf32> to vector<2x1xf32>
    %399 = vector.shape_cast %395 : vector<2x1xf32> to vector<1x2x1xf32>
    tpu.vector_store %arg7[%396, %c0_105, %c0_106], %399 {strides = array<i32>} : memref<8x2x1xf32, #tpu.memory_space<vmem>>, vector<1x2x1xf32>,
    %c7_i32 = arith.constant 7 : i32
    %400 = arith.index_cast %c7_i32 : i32 to index
    %c0_107 = arith.constant 0 : index
    %c0_108 = arith.constant 0 : index
    %401 = vector.load %arg8[%400, %c0_107, %c0_108] : memref<8x2x128xf32, #tpu.memory_space<vmem>>, vector<1x2x128xf32>
    %402 = vector.shape_cast %401 : vector<1x2x128xf32> to vector<2x128xf32>
    %403 = arith.index_cast %c7_i32 : i32 to index
    %c0_109 = arith.constant 0 : index
    %c0_110 = arith.constant 0 : index
    %404 = vector.load %arg1[%403, %c0_109, %c0_110] : memref<8x2x1xf32, #tpu.memory_space<vmem>>, vector<1x2x1xf32>
    %405 = vector.shape_cast %404 : vector<1x2x1xf32> to vector<2x1xf32>
    %cst_111 = arith.constant dense<0.000000e+00> : vector<2x128xf32>
    %406 = tpu.matmul %382, %8, %cst_111 {dimension_numbers = #tpu.dot_dimension_numbers<[1], [0], [0], [1], [0, 0, 1, 1], [], []>} : vector<2x32xf32>, vector<32x128xf32>, vector<2x128xf32> -> vector<2x128xf32>
    %407 = arith.addf %402, %406 : vector<2x128xf32>
    %408 = vector.extract_strided_slice %407 {offsets = [0, 0], sizes = [2, 32], strides = [1, 1]} : vector<2x128xf32> to vector<2x32xf32>
    %409 = arith.negf %408 : vector<2x32xf32>
    %410 = math.exp %409 : vector<2x32xf32>
    %cst_112 = arith.constant 1.000000e+00 : f32
    %411 = vector.broadcast %cst_112 : f32 to vector<2x32xf32>
    %412 = arith.addf %411, %410 : vector<2x32xf32>
    %413 = arith.divf %411, %412 : vector<2x32xf32>
    %414 = vector.extract_strided_slice %407 {offsets = [0, 32], sizes = [2, 32], strides = [1, 1]} : vector<2x128xf32> to vector<2x32xf32>
    %415 = arith.negf %414 : vector<2x32xf32>
    %416 = math.exp %415 : vector<2x32xf32>
    %cst_113 = arith.constant 1.000000e+00 : f32
    %417 = vector.broadcast %cst_113 : f32 to vector<2x32xf32>
    %418 = arith.addf %417, %416 : vector<2x32xf32>
    %419 = arith.divf %417, %418 : vector<2x32xf32>
    %420 = vector.extract_strided_slice %407 {offsets = [0, 64], sizes = [2, 32], strides = [1, 1]} : vector<2x128xf32> to vector<2x32xf32>
    %421 = math.tanh %420 : vector<2x32xf32>
    %422 = vector.extract_strided_slice %407 {offsets = [0, 96], sizes = [2, 32], strides = [1, 1]} : vector<2x128xf32> to vector<2x32xf32>
    %423 = arith.negf %422 : vector<2x32xf32>
    %424 = math.exp %423 : vector<2x32xf32>
    %cst_114 = arith.constant 1.000000e+00 : f32
    %425 = vector.broadcast %cst_114 : f32 to vector<2x32xf32>
    %426 = arith.addf %425, %424 : vector<2x32xf32>
    %427 = arith.divf %425, %426 : vector<2x32xf32>
    %428 = arith.mulf %419, %385 : vector<2x32xf32>
    %429 = arith.mulf %413, %421 : vector<2x32xf32>
    %430 = arith.addf %428, %429 : vector<2x32xf32>
    %431 = math.tanh %430 : vector<2x32xf32>
    %432 = arith.mulf %427, %431 : vector<2x32xf32>
    %cst_115 = arith.constant 5.000000e-01 : f32
    %433 = vector.broadcast %cst_115 : f32 to vector<2x1xf32>
    %434 = arith.cmpf ogt, %405, %433 : vector<2x1xf32>
    %435 = vector.shape_cast %434 : vector<2x1xi1> to vector<2x1xi1>
    %436 = vector.broadcast %435 : vector<2x1xi1> to vector<2x32xi1>
    %437 = arith.select %436, %432, %382 : vector<2x32xi1>, vector<2x32xf32>
    %438 = vector.shape_cast %434 : vector<2x1xi1> to vector<2x1xi1>
    %439 = vector.broadcast %438 : vector<2x1xi1> to vector<2x32xi1>
    %440 = arith.select %439, %430, %385 : vector<2x32xi1>, vector<2x32xf32>
    %441 = arith.mulf %437, %11 : vector<2x32xf32>
    %cst_116 = arith.constant dense<0.000000e+00> : vector<2xf32>
    %442 = vector.multi_reduction <add>, %441, %cst_116 [1] : vector<2x32xf32> to vector<2xf32>
    %443 = vector.shape_cast %442 : vector<2xf32> to vector<2x1xf32>
    %444 = vector.broadcast %12 : vector<1x1xf32> to vector<2x1xf32>
    %445 = arith.addf %443, %444 : vector<2x1xf32>
    %446 = arith.negf %445 : vector<2x1xf32>
    %447 = math.exp %446 : vector<2x1xf32>
    %cst_117 = arith.constant 1.000000e+00 : f32
    %448 = vector.broadcast %cst_117 : f32 to vector<2x1xf32>
    %449 = arith.addf %448, %447 : vector<2x1xf32>
    %450 = arith.divf %448, %449 : vector<2x1xf32>
    %451 = arith.index_cast %c7_i32 : i32 to index
    %c0_118 = arith.constant 0 : index
    %c0_119 = arith.constant 0 : index
    %452 = vector.load %arg7[%451, %c0_118, %c0_119] : memref<8x2x1xf32, #tpu.memory_space<vmem>>, vector<1x2x1xf32>
    %453 = vector.shape_cast %452 : vector<1x2x1xf32> to vector<2x1xf32>
    %454 = vector.shape_cast %450 : vector<2x1xf32> to vector<1x2x1xf32>
    tpu.vector_store %arg7[%451, %c0_118, %c0_119], %454 {strides = array<i32>} : memref<8x2x1xf32, #tpu.memory_space<vmem>>, vector<1x2x1xf32>,
    %c8_i32 = arith.constant 8 : i32
    return
  }
}

</mosaic_0001>

<llo_original>
// kernel: tpu_custom_call.1
$region0: #{tpu_custom_call.1}
  #allocation0 [shape = 'u32[]', space=smem, size = 0x4, offset = 0x4, fixed_abs, tag = 'smem constant byte address 0x4 - core index']
  #allocation1 [shape = 'u32[72,128]{1,0:T(1,128)}', space=vmem, size = 0x9000, scoped, tag = 'internal scratch']
  #allocation2 [shape = 'f32[8,2,128]{2,1,0:T(2,128)}', space=vmem, size = 0x2000, scoped, tag = 'scratch operand']
  #allocation3 [shape = 'f32[1,1]{1,0:T(1,128)S(1)}', space=vmem, size = 0x200, scoped, tag = 'scoped memory for tpu_custom_call.1']
  %s0 = inlined_call_operand.vmem [shape: f32[16,24], index: 0, kind: input, shape index: {}]
  %s1 = inlined_call_operand.vmem [shape: f32[8,2,1], index: 1, kind: input, shape index: {}]
  %s2 = inlined_call_operand.hbm [shape: f32[24,128], index: 2, kind: input, shape index: {}]
  %s3 = inlined_call_operand.hbm [shape: f32[32,128], index: 3, kind: input, shape index: {}]
  %s4 = inlined_call_operand.vmem [shape: f32[1,128], index: 4, kind: input, shape index: {}]
  %s5 = inlined_call_operand.vmem [shape: f32[1,32], index: 5, kind: input, shape index: {}]
  %s6 = inlined_call_operand.<no memory space> [shape: f32[1,1], index: 6, kind: input, shape index: {}]
  %s7 = inlined_call_operand.vmem [shape: f32[8,2,1], index: 7, kind: output, shape index: {}]
  %s8 = sld [smem:[#allocation0]]
  $region46: #{tpu_custom_call.1} parent=0
    _
  %s10 = ssub.s32 1, %s8
  %s11 = scalar_select 0, %s10, %s8
  %v12 = vstv %s6
  %13 = vst [vmem:[#allocation3] sm:$0x1] %v12
  $region1: #{tpu_custom_call.1} parent=0
    #allocation4 [shape = 'u8[12288]{0}', space=vmem, size = 0x3000, scoped, tag = 'input window, operand 2, single buffered']
    #allocation5 [shape = 's32[1]{0}', space=sflag, size = 0x4, scoped, tag = 'scoped memory for tpu_custom_call.1']
    #allocation6 [shape = 'u8[16384]{0}', space=vmem, size = 0x4000, scoped, tag = 'input window, operand 3, single buffered']
    #allocation7 [shape = 's32[1]{0}', space=sflag, size = 0x4, scoped, tag = 'scoped memory for tpu_custom_call.1']
    %14 = vsyncpa [#allocation5], 0
    %15 = vsyncpa [#allocation7], 0
    // Predicated region
    $region2: #{tpu_custom_call.1} parent=1 // pred_check
      _
    $region3: #{tpu_custom_call.1} parent=1 // pred_check_branch
      %17 = sbr.rel (0) target = $region5
    $region4: #{tpu_custom_call.1} parent=1 // pred_region
      _
    $region5: #{tpu_custom_call.1} parent=1 // pred_fallthru
      _
    // Predicated region
    $region6: #{tpu_custom_call.1} parent=1 // pred_check
      _
    $region7: #{tpu_custom_call.1} parent=1 // pred_check_branch
      %19 = sbr.rel (0) target = $region9
    $region8: #{tpu_custom_call.1} parent=1 // pred_region
      _
    $region9: #{tpu_custom_call.1} parent=1 // pred_fallthru
      _
    // Predicated region
    $region10: #{tpu_custom_call.1} parent=1 // pred_check
      _
    $region11: #{tpu_custom_call.1} parent=1 // pred_check_branch
      %21 = sbr.rel (0) target = $region13
    $region12: #{tpu_custom_call.1} parent=1 // pred_region
      %23 = vsyncadd [#allocation5], 0
      %s24 = sshll.u32 %s2, 4
      %s25 = int_to_ptr.hbm [resolvable:$true] %s24
      %s26 = sshll.u32 [#allocation4], 4
      %s27 = int_to_ptr.vmem [resolvable:$true] %s26
      %32 = dma.hbm_to_vmem [thread:$0]  %s25, 384, %s27, [#allocation5], 128, 128, 8
    $region13: #{tpu_custom_call.1} parent=1 // pred_fallthru
      _
    // Predicated region
    $region14: #{tpu_custom_call.1} parent=1 // pred_check
      _
    $region15: #{tpu_custom_call.1} parent=1 // pred_check_branch
      %34 = sbr.rel (0) target = $region17
    $region16: #{tpu_custom_call.1} parent=1 // pred_region
      %36 = vsyncadd [#allocation7], 0
      %s37 = sshll.u32 %s3, 4
      %s38 = int_to_ptr.hbm [resolvable:$true] %s37
      %s39 = sshll.u32 [#allocation6], 4
      %s40 = int_to_ptr.vmem [resolvable:$true] %s39
      %45 = dma.hbm_to_vmem [thread:$0]  %s38, 512, %s40, [#allocation7], 128, 128, 8
    $region17: #{tpu_custom_call.1} parent=1 // pred_fallthru
      _
    // Predicated region
    $region18: #{tpu_custom_call.1} parent=1 // pred_check
      _
    $region19: #{tpu_custom_call.1} parent=1 // pred_check_branch
      %47 = sbr.rel (0) target = $region21
    $region20: #{tpu_custom_call.1} parent=1 // pred_region
      _
    $region21: #{tpu_custom_call.1} parent=1 // pred_fallthru
      _
    // Predicated region
    $region22: #{tpu_custom_call.1} parent=1 // pred_check
      _
    $region23: #{tpu_custom_call.1} parent=1 // pred_check_branch
      %49 = sbr.rel (0) target = $region25
    $region24: #{tpu_custom_call.1} parent=1 // pred_region
      _
    $region25: #{tpu_custom_call.1} parent=1 // pred_fallthru
      _
    // Predicated region
    $region26: #{tpu_custom_call.1} parent=1 // pred_check
      _
    $region27: #{tpu_custom_call.1} parent=1 // pred_check_branch
      %51 = sbr.rel (0) target = $region29
    $region28: #{tpu_custom_call.1} parent=1 // pred_region
      _
    $region29: #{tpu_custom_call.1} parent=1 // pred_fallthru
      _
    // Predicated region
    $region30: #{tpu_custom_call.1} parent=1 // pred_check
      _
    $region31: #{tpu_custom_call.1} parent=1 // pred_check_branch
      %53 = sbr.rel (0) target = $region33
    $region32: #{tpu_custom_call.1} parent=1 // pred_region
      %55 = dma.done [#allocation5], 384
    $region33: #{tpu_custom_call.1} parent=1 // pred_fallthru
      _
    // Predicated region
    $region34: #{tpu_custom_call.1} parent=1 // pred_check
      _
    $region35: #{tpu_custom_call.1} parent=1 // pred_check_branch
      %57 = sbr.rel (0) target = $region37
    $region36: #{tpu_custom_call.1} parent=1 // pred_region
      %59 = dma.done [#allocation7], 512
    $region37: #{tpu_custom_call.1} parent=1 // pred_fallthru
      _
    %v60 = vld [vmem:[%s0] sm:$0xff]
    %v61 = vld [vmem:[%s0 + $0x8] sm:$0xff]
    %v62 = vld [vmem:[#allocation4] sm:$0xff]
    %v63 = vld [vmem:[#allocation4 + $0x8] sm:$0xff]
    %v64 = vld [vmem:[#allocation4 + $0x10] sm:$0xff]
    %v65 = vld [vmem:[%s4] sm:$0x1]
    %v67 = vperm.slane %v65, 0
    %vm69 = vcmask 195584
    %v71 = vsel %vm69, %v60, 0
    %v74 = vsel %vm69, %v61, 0
    %76 = vmatpush.msra.mxu0 0.0
    %77 = vmatpush.msra.mxu0 0.0
    %78 = vmatpush.msra.mxu0 0.0
    %79 = vmatpush.msra.mxu0 0.0
    %80 = vmatpush.msra.mxu0 0.0
    %81 = vmatpush.msra.mxu0 0.0
    %82 = vmatpush.msra.mxu0 0.0
    %83 = vmatpush.msra.mxu0 0.0
    %84 = vmatpush.msra.mxu0 0.0
    %85 = vmatpush.msra.mxu0 0.0
    %86 = vmatpush.msra.mxu0 0.0
    %87 = vmatpush.msra.mxu0 0.0
    %88 = vmatpush.msra.mxu0 0.0
    %89 = vmatpush.msra.mxu0 %v64
    %90 = vmatpush.msra.mxu0 %v63
    %91 = vmatpush.msra.mxu0 %v62
    %92 = vmatmul.f32.gmra.mxu0 %v71
    %v93 = vpop.f32.mrf.mxu0
    %v94 = vadd.f32 %v67, %v93
    %95 = vmatmul.f32.gmra.mxu0 %v74
    %v96 = vpop.f32.mrf.mxu0
    %v97 = vadd.f32 %v67, %v96
    %98 = vdwg.mxu0
    %v101 = vrot.slane %v94, 2
    %v102 = vrot.slane %v94, 4
    %v103 = vrot.slane %v94, 6
    %v104 = vrot.slane %v97, 2
    %v105 = vrot.slane %v97, 4
    %v106 = vrot.slane %v97, 6
    %113 = vst [vmem:[#allocation2] sm:$0x3] %v94
    %114 = vst [vmem:[#allocation2 + $0x2] sm:$0x3] %v101
    %115 = vst [vmem:[#allocation2 + $0x4] sm:$0x3] %v102
    %116 = vst [vmem:[#allocation2 + $0x6] sm:$0x3] %v103
    %117 = vst [vmem:[#allocation2 + $0x8] sm:$0x3] %v97
    %118 = vst [vmem:[#allocation2 + $0xa] sm:$0x3] %v104
    %119 = vst [vmem:[#allocation2 + $0xc] sm:$0x3] %v105
    %120 = vst [vmem:[#allocation2 + $0xe] sm:$0x3] %v106
    %v121 = vld [vmem:[#allocation6] sm:$0xff]
    %v122 = vld [vmem:[#allocation6 + $0x8] sm:$0xff]
    %v123 = vld [vmem:[#allocation6 + $0x10] sm:$0xff]
    %v124 = vld [vmem:[#allocation6 + $0x18] sm:$0xff]
    %v125 = vld [vmem:[%s5] sm:$0x1]
    %v127 = vperm.slane %v125, 0
    %v128 = vld [vmem:[#allocation3] sm:$0x1]
    %v129 = vld [vmem:[#allocation2] sm:$0x3]
    %v130 = vld [vmem:[%s1] sm:$0x3]
    %vm131 = vcmask 261120
    %v133 = vsel %vm131, 0.0, 0
    %135 = vmatpush.msra.mxu0 0.0
    %136 = vmatpush.msra.mxu0 0.0
    %137 = vmatpush.msra.mxu0 0.0
    %138 = vmatpush.msra.mxu0 0.0
    %139 = vmatpush.msra.mxu0 0.0
    %140 = vmatpush.msra.mxu0 0.0
    %141 = vmatpush.msra.mxu0 0.0
    %142 = vmatpush.msra.mxu0 0.0
    %143 = vmatpush.msra.mxu0 0.0
    %144 = vmatpush.msra.mxu0 0.0
    %145 = vmatpush.msra.mxu0 0.0
    %146 = vmatpush.msra.mxu0 0.0
    %147 = vmatpush.msra.mxu0 %v124
    %148 = vmatpush.msra.mxu0 %v123
    %149 = vmatpush.msra.mxu0 %v122
    %150 = vmatpush.msra.mxu0 %v121
    %151 = vmatmul.f32.gmra.mxu0 %v133
    %v152 = vpop.f32.mrf.mxu0
    %v153 = vadd.f32 0.0, %v152
    %154 = vdwg.mxu0
    %v155 = vadd.f32 %v129, %v153
    %v156 = vxor.u32 %v155, 2147483648
    %v157 = vmul.f32 %v156, 1.442695
    %v158 = vpow.pop %v157
    %v159 = vadd.f32 %v158, 1.0
    %v160 = vrcp.pop %v159
    %v161 = vmul.f32 %v159, %v160
    %v162 = vsub.f32 1.0, %v161
    %v163 = vmul.f32 %v160, %v162
    %v164 = vadd.f32 %v160, %v163
    %vm165 = vweird.f32 %v159
    %vm166 = vweird.f32 %v160
    %vm167 = vmor %vm165, %vm166
    %v168 = vsel %vm167, %v160, %v164
    %v169 = vand.u32 2147483647, %v159
    %vm170 = vcmp.eq.f32.partialorder %v169, 8.507059e+37
    %v171 = vand.u32 %v159, 2147483648
    %v172 = vor.u32 1.1754944e-38, %v171
    %v173 = vsel %vm170, %v172, %v168
    %v174 = vmul.f32 1.0, %v173
    %v175 = vtanh.pop %v155
    %v176 = vmul.f32 %v174, 0.0
    %178 = vrot.lane.b32.xlu0 %v175, 64
    %v179 = vpop.permute.xlu0 %178
    %v181 = vmul.f32 %v174, %v179
    %183 = vrot.lane.b32.xlu0 %v181, 32
    %v184 = vpop.permute.xlu0 %183
    %v186 = vadd.f32 %v176, %v184
    %v187 = vtanh.pop %v186
    %189 = vrot.lane.b32.xlu0 %v187, 64
    %v190 = vpop.permute.xlu0 %189
    %v192 = vmul.f32 %v174, %v190
    %vm193 = vcmp.gt.f32.partialorder %v130, 0.5
    %v194 = vsel %vm193, 1, 0
    %195 = vset.pattern.permute.xlu0 0
    %196 = vperm.xlu0 %195, %v194
    %v197 = vpop.permute.xlu0 %196
    %vm198 = vcmp.eq.s32.totalorder %v197, 1
    %v199 = vsel %vm198, %v192, 0.0
    %v200 = vsel %vm198, %v186, 0.0
    %201 = vrot.lane.b32.xlu0 %v127, 96
    %v202 = vpop.permute.xlu0 %201
    %v204 = vmul.f32 %v199, %v202
    %206 = vrot.lane.b32.xlu0 %v204, 32
    %v207 = vpop.permute.xlu0 %206
    %vm209 = vcmask 254976
    %v210 = vsel %vm209, %v207, 0.0
    %211 = vadd.xlane.f32.xlu0 %v210
    %v212 = vpop.xlane.xlu0 %211
    %v214 = vperm.slane %v128, 0
    %v216 = vadd.f32 %v212, %v214
    %v217 = vxor.u32 %v216, 2147483648
    %v218 = vmul.f32 %v217, 1.442695
    %v219 = vpow.pop %v218
    %v220 = vadd.f32 %v219, 1.0
    %v221 = vrcp.pop %v220
    %v222 = vmul.f32 %v220, %v221
    %v223 = vsub.f32 1.0, %v222
    %v224 = vmul.f32 %v221, %v223
    %v225 = vadd.f32 %v221, %v224
    %vm226 = vweird.f32 %v220
    %vm227 = vweird.f32 %v221
    %vm228 = vmor %vm226, %vm227
    %v229 = vsel %vm228, %v221, %v225
    %v230 = vand.u32 2147483647, %v220
    %vm231 = vcmp.eq.f32.partialorder %v230, 8.507059e+37
    %v232 = vand.u32 %v220, 2147483648
    %v233 = vor.u32 1.1754944e-38, %v232
    %v234 = vsel %vm231, %v233, %v229
    %v235 = vmul.f32 1.0, %v234
    %vm236 = vcmask 1024
    %237 = vst.msk [vmem:[%s7] sm:$0x3] %vm236, %v235
    %s238 = scalar_lea.vmem [#allocation2], 2
    %v239 = vld [vmem:[%s238] sm:$0x3]
    %s240 = scalar_lea.vmem %s1, 2
    %v241 = vld [vmem:[%s240] sm:$0x3]
    %243 = vrot.lane.b32.xlu0 %v199, 32
    %v244 = vpop.permute.xlu0 %243
    %v245 = vsel %vm131, %v244, 0
    %247 = vmatpush.msra.mxu0 0.0
    %248 = vmatpush.msra.mxu0 0.0
    %249 = vmatpush.msra.mxu0 0.0
    %250 = vmatpush.msra.mxu0 0.0
    %251 = vmatpush.msra.mxu0 0.0
    %252 = vmatpush.msra.mxu0 0.0
    %253 = vmatpush.msra.mxu0 0.0
    %254 = vmatpush.msra.mxu0 0.0
    %255 = vmatpush.msra.mxu0 0.0
    %256 = vmatpush.msra.mxu0 0.0
    %257 = vmatpush.msra.mxu0 0.0
    %258 = vmatpush.msra.mxu0 0.0
    %259 = vmatpush.msra.mxu0 %v124
    %260 = vmatpush.msra.mxu0 %v123
    %261 = vmatpush.msra.mxu0 %v122
    %262 = vmatpush.msra.mxu0 %v121
    %263 = vmatmul.f32.gmra.mxu0 %v245
    %v264 = vpop.f32.mrf.mxu0
    %v265 = vadd.f32 0.0, %v264
    %266 = vdwg.mxu0
    %v267 = vadd.f32 %v239, %v265
    %v268 = vxor.u32 %v267, 2147483648
    %v269 = vmul.f32 %v268, 1.442695
    %v270 = vpow.pop %v269
    %v271 = vadd.f32 %v270, 1.0
    %v272 = vrcp.pop %v271
    %v273 = vmul.f32 %v271, %v272
    %v274 = vsub.f32 1.0, %v273
    %v275 = vmul.f32 %v272, %v274
    %v276 = vadd.f32 %v272, %v275
    %vm277 = vweird.f32 %v271
    %vm278 = vweird.f32 %v272
    %vm279 = vmor %vm277, %vm278
    %v280 = vsel %vm279, %v272, %v276
    %v281 = vand.u32 2147483647, %v271
    %vm282 = vcmp.eq.f32.partialorder %v281, 8.507059e+37
    %v283 = vand.u32 %v271, 2147483648
    %v284 = vor.u32 1.1754944e-38, %v283
    %v285 = vsel %vm282, %v284, %v280
    %v286 = vmul.f32 1.0, %v285
    %v287 = vtanh.pop %v267
    %v288 = vmul.f32 %v286, %v200
    %290 = vrot.lane.b32.xlu0 %v287, 64
    %v291 = vpop.permute.xlu0 %290
    %v293 = vmul.f32 %v286, %v291
    %295 = vrot.lane.b32.xlu0 %v293, 32
    %v296 = vpop.permute.xlu0 %295
    %v298 = vadd.f32 %v288, %v296
    %v299 = vtanh.pop %v298
    %301 = vrot.lane.b32.xlu0 %v299, 64
    %v302 = vpop.permute.xlu0 %301
    %v304 = vmul.f32 %v286, %v302
    %vm305 = vcmp.gt.f32.partialorder %v241, 0.5
    %v306 = vsel %vm305, 1, 0
    %307 = vset.pattern.permute.xlu0 0
    %308 = vperm.xlu0 %307, %v306
    %v309 = vpop.permute.xlu0 %308
    %vm310 = vcmp.eq.s32.totalorder %v309, 1
    %v311 = vsel %vm310, %v304, %v199
    %v312 = vsel %vm310, %v298, %v200
    %v313 = vmul.f32 %v311, %v202
    %315 = vrot.lane.b32.xlu0 %v313, 32
    %v316 = vpop.permute.xlu0 %315
    %v318 = vsel %vm209, %v316, 0.0
    %319 = vadd.xlane.f32.xlu0 %v318
    %v320 = vpop.xlane.xlu0 %319
    %v321 = vadd.f32 %v320, %v214
    %v322 = vxor.u32 %v321, 2147483648
    %v323 = vmul.f32 %v322, 1.442695
    %v324 = vpow.pop %v323
    %v325 = vadd.f32 %v324, 1.0
    %v326 = vrcp.pop %v325
    %v327 = vmul.f32 %v325, %v326
    %v328 = vsub.f32 1.0, %v327
    %v329 = vmul.f32 %v326, %v328
    %v330 = vadd.f32 %v326, %v329
    %vm331 = vweird.f32 %v325
    %vm332 = vweird.f32 %v326
    %vm333 = vmor %vm331, %vm332
    %v334 = vsel %vm333, %v326, %v330
    %v335 = vand.u32 2147483647, %v325
    %vm336 = vcmp.eq.f32.partialorder %v335, 8.507059e+37
    %v337 = vand.u32 %v325, 2147483648
    %v338 = vor.u32 1.1754944e-38, %v337
    %v339 = vsel %vm336, %v338, %v334
    %v340 = vmul.f32 1.0, %v339
    %s341 = scalar_lea.vmem %s7, 2
    %342 = vst.msk [vmem:[%s341] sm:$0x3] %vm236, %v340
    %s343 = scalar_lea.vmem [#allocation2], 4
    %v344 = vld [vmem:[%s343] sm:$0x3]
    %s345 = scalar_lea.vmem %s1, 4
    %v346 = vld [vmem:[%s345] sm:$0x3]
    %348 = vrot.lane.b32.xlu0 %v311, 32
    %v349 = vpop.permute.xlu0 %348
    %v350 = vsel %vm131, %v349, 0
    %352 = vmatpush.msra.mxu0 0.0
    %353 = vmatpush.msra.mxu0 0.0
    %354 = vmatpush.msra.mxu0 0.0
    %355 = vmatpush.msra.mxu0 0.0
    %356 = vmatpush.msra.mxu0 0.0
    %357 = vmatpush.msra.mxu0 0.0
    %358 = vmatpush.msra.mxu0 0.0
    %359 = vmatpush.msra.mxu0 0.0
    %360 = vmatpush.msra.mxu0 0.0
    %361 = vmatpush.msra.mxu0 0.0
    %362 = vmatpush.msra.mxu0 0.0
    %363 = vmatpush.msra.mxu0 0.0
    %364 = vmatpush.msra.mxu0 %v124
    %365 = vmatpush.msra.mxu0 %v123
    %366 = vmatpush.msra.mxu0 %v122
    %367 = vmatpush.msra.mxu0 %v121
    %368 = vmatmul.f32.gmra.mxu0 %v350
    %v369 = vpop.f32.mrf.mxu0
    %v370 = vadd.f32 0.0, %v369
    %371 = vdwg.mxu0
    %v372 = vadd.f32 %v344, %v370
    %v373 = vxor.u32 %v372, 2147483648
    %v374 = vmul.f32 %v373, 1.442695
    %v375 = vpow.pop %v374
    %v376 = vadd.f32 %v375, 1.0
    %v377 = vrcp.pop %v376
    %v378 = vmul.f32 %v376, %v377
    %v379 = vsub.f32 1.0, %v378
    %v380 = vmul.f32 %v377, %v379
    %v381 = vadd.f32 %v377, %v380
    %vm382 = vweird.f32 %v376
    %vm383 = vweird.f32 %v377
    %vm384 = vmor %vm382, %vm383
    %v385 = vsel %vm384, %v377, %v381
    %v386 = vand.u32 2147483647, %v376
    %vm387 = vcmp.eq.f32.partialorder %v386, 8.507059e+37
    %v388 = vand.u32 %v376, 2147483648
    %v389 = vor.u32 1.1754944e-38, %v388
    %v390 = vsel %vm387, %v389, %v385
    %v391 = vmul.f32 1.0, %v390
    %v392 = vtanh.pop %v372
    %v393 = vmul.f32 %v391, %v312
    %395 = vrot.lane.b32.xlu0 %v392, 64
    %v396 = vpop.permute.xlu0 %395
    %v398 = vmul.f32 %v391, %v396
    %400 = vrot.lane.b32.xlu0 %v398, 32
    %v401 = vpop.permute.xlu0 %400
    %v403 = vadd.f32 %v393, %v401
    %v404 = vtanh.pop %v403
    %406 = vrot.lane.b32.xlu0 %v404, 64
    %v407 = vpop.permute.xlu0 %406
    %v409 = vmul.f32 %v391, %v407
    %vm410 = vcmp.gt.f32.partialorder %v346, 0.5
    %v411 = vsel %vm410, 1, 0
    %412 = vset.pattern.permute.xlu0 0
    %413 = vperm.xlu0 %412, %v411
    %v414 = vpop.permute.xlu0 %413
    %vm415 = vcmp.eq.s32.totalorder %v414, 1
    %v416 = vsel %vm415, %v409, %v311
    %v417 = vsel %vm415, %v403, %v312
    %v418 = vmul.f32 %v416, %v202
    %420 = vrot.lane.b32.xlu0 %v418, 32
    %v421 = vpop.permute.xlu0 %420
    %v423 = vsel %vm209, %v421, 0.0
    %424 = vadd.xlane.f32.xlu0 %v423
    %v425 = vpop.xlane.xlu0 %424
    %v426 = vadd.f32 %v425, %v214
    %v427 = vxor.u32 %v426, 2147483648
    %v428 = vmul.f32 %v427, 1.442695
    %v429 = vpow.pop %v428
    %v430 = vadd.f32 %v429, 1.0
    %v431 = vrcp.pop %v430
    %v432 = vmul.f32 %v430, %v431
    %v433 = vsub.f32 1.0, %v432
    %v434 = vmul.f32 %v431, %v433
    %v435 = vadd.f32 %v431, %v434
    %vm436 = vweird.f32 %v430
    %vm437 = vweird.f32 %v431
    %vm438 = vmor %vm436, %vm437
    %v439 = vsel %vm438, %v431, %v435
    %v440 = vand.u32 2147483647, %v430
    %vm441 = vcmp.eq.f32.partialorder %v440, 8.507059e+37
    %v442 = vand.u32 %v430, 2147483648
    %v443 = vor.u32 1.1754944e-38, %v442
    %v444 = vsel %vm441, %v443, %v439
    %v445 = vmul.f32 1.0, %v444
    %s446 = scalar_lea.vmem %s7, 4
    %447 = vst.msk [vmem:[%s446] sm:$0x3] %vm236, %v445
    %s448 = scalar_lea.vmem [#allocation2], 6
    %v449 = vld [vmem:[%s448] sm:$0x3]
    %s450 = scalar_lea.vmem %s1, 6
    %v451 = vld [vmem:[%s450] sm:$0x3]
    %453 = vrot.lane.b32.xlu0 %v416, 32
    %v454 = vpop.permute.xlu0 %453
    %v455 = vsel %vm131, %v454, 0
    %457 = vmatpush.msra.mxu0 0.0
    %458 = vmatpush.msra.mxu0 0.0
    %459 = vmatpush.msra.mxu0 0.0
    %460 = vmatpush.msra.mxu0 0.0
    %461 = vmatpush.msra.mxu0 0.0
    %462 = vmatpush.msra.mxu0 0.0
    %463 = vmatpush.msra.mxu0 0.0
    %464 = vmatpush.msra.mxu0 0.0
    %465 = vmatpush.msra.mxu0 0.0
    %466 = vmatpush.msra.mxu0 0.0
    %467 = vmatpush.msra.mxu0 0.0
    %468 = vmatpush.msra.mxu0 0.0
    %469 = vmatpush.msra.mxu0 %v124
    %470 = vmatpush.msra.mxu0 %v123
    %471 = vmatpush.msra.mxu0 %v122
    %472 = vmatpush.msra.mxu0 %v121
    %473 = vmatmul.f32.gmra.mxu0 %v455
    %v474 = vpop.f32.mrf.mxu0
    %v475 = vadd.f32 0.0, %v474
    %476 = vdwg.mxu0
    %v477 = vadd.f32 %v449, %v475
    %v478 = vxor.u32 %v477, 2147483648
    %v479 = vmul.f32 %v478, 1.442695
    %v480 = vpow.pop %v479
    %v481 = vadd.f32 %v480, 1.0
    %v482 = vrcp.pop %v481
    %v483 = vmul.f32 %v481, %v482
    %v484 = vsub.f32 1.0, %v483
    %v485 = vmul.f32 %v482, %v484
    %v486 = vadd.f32 %v482, %v485
    %vm487 = vweird.f32 %v481
    %vm488 = vweird.f32 %v482
    %vm489 = vmor %vm487, %vm488
    %v490 = vsel %vm489, %v482, %v486
    %v491 = vand.u32 2147483647, %v481
    %vm492 = vcmp.eq.f32.partialorder %v491, 8.507059e+37
    %v493 = vand.u32 %v481, 2147483648
    %v494 = vor.u32 1.1754944e-38, %v493
    %v495 = vsel %vm492, %v494, %v490
    %v496 = vmul.f32 1.0, %v495
    %v497 = vtanh.pop %v477
    %v498 = vmul.f32 %v496, %v417
    %500 = vrot.lane.b32.xlu0 %v497, 64
    %v501 = vpop.permute.xlu0 %500
    %v503 = vmul.f32 %v496, %v501
    %505 = vrot.lane.b32.xlu0 %v503, 32
    %v506 = vpop.permute.xlu0 %505
    %v508 = vadd.f32 %v498, %v506
    %v509 = vtanh.pop %v508
    %511 = vrot.lane.b32.xlu0 %v509, 64
    %v512 = vpop.permute.xlu0 %511
    %v514 = vmul.f32 %v496, %v512
    %vm515 = vcmp.gt.f32.partialorder %v451, 0.5
    %v516 = vsel %vm515, 1, 0
    %517 = vset.pattern.permute.xlu0 0
    %518 = vperm.xlu0 %517, %v516
    %v519 = vpop.permute.xlu0 %518
    %vm520 = vcmp.eq.s32.totalorder %v519, 1
    %v521 = vsel %vm520, %v514, %v416
    %v522 = vsel %vm520, %v508, %v417
    %v523 = vmul.f32 %v521, %v202
    %525 = vrot.lane.b32.xlu0 %v523, 32
    %v526 = vpop.permute.xlu0 %525
    %v528 = vsel %vm209, %v526, 0.0
    %529 = vadd.xlane.f32.xlu0 %v528
    %v530 = vpop.xlane.xlu0 %529
    %v531 = vadd.f32 %v530, %v214
    %v532 = vxor.u32 %v531, 2147483648
    %v533 = vmul.f32 %v532, 1.442695
    %v534 = vpow.pop %v533
    %v535 = vadd.f32 %v534, 1.0
    %v536 = vrcp.pop %v535
    %v537 = vmul.f32 %v535, %v536
    %v538 = vsub.f32 1.0, %v537
    %v539 = vmul.f32 %v536, %v538
    %v540 = vadd.f32 %v536, %v539
    %vm541 = vweird.f32 %v535
    %vm542 = vweird.f32 %v536
    %vm543 = vmor %vm541, %vm542
    %v544 = vsel %vm543, %v536, %v540
    %v545 = vand.u32 2147483647, %v535
    %vm546 = vcmp.eq.f32.partialorder %v545, 8.507059e+37
    %v547 = vand.u32 %v535, 2147483648
    %v548 = vor.u32 1.1754944e-38, %v547
    %v549 = vsel %vm546, %v548, %v544
    %v550 = vmul.f32 1.0, %v549
    %s551 = scalar_lea.vmem %s7, 6
    %552 = vst.msk [vmem:[%s551] sm:$0x3] %vm236, %v550
    %s553 = scalar_lea.vmem [#allocation2], 8
    %v554 = vld [vmem:[%s553] sm:$0x3]
    %s555 = scalar_lea.vmem %s1, 8
    %v556 = vld [vmem:[%s555] sm:$0x3]
    %558 = vrot.lane.b32.xlu0 %v521, 32
    %v559 = vpop.permute.xlu0 %558
    %v560 = vsel %vm131, %v559, 0
    %562 = vmatpush.msra.mxu0 0.0
    %563 = vmatpush.msra.mxu0 0.0
    %564 = vmatpush.msra.mxu0 0.0
    %565 = vmatpush.msra.mxu0 0.0
    %566 = vmatpush.msra.mxu0 0.0
    %567 = vmatpush.msra.mxu0 0.0
    %568 = vmatpush.msra.mxu0 0.0
    %569 = vmatpush.msra.mxu0 0.0
    %570 = vmatpush.msra.mxu0 0.0
    %571 = vmatpush.msra.mxu0 0.0
    %572 = vmatpush.msra.mxu0 0.0
    %573 = vmatpush.msra.mxu0 0.0
    %574 = vmatpush.msra.mxu0 %v124
    %575 = vmatpush.msra.mxu0 %v123
    %576 = vmatpush.msra.mxu0 %v122
    %577 = vmatpush.msra.mxu0 %v121
    %578 = vmatmul.f32.gmra.mxu0 %v560
    %v579 = vpop.f32.mrf.mxu0
    %v580 = vadd.f32 0.0, %v579
    %581 = vdwg.mxu0
    %v582 = vadd.f32 %v554, %v580
    %v583 = vxor.u32 %v582, 2147483648
    %v584 = vmul.f32 %v583, 1.442695
    %v585 = vpow.pop %v584
    %v586 = vadd.f32 %v585, 1.0
    %v587 = vrcp.pop %v586
    %v588 = vmul.f32 %v586, %v587
    %v589 = vsub.f32 1.0, %v588
    %v590 = vmul.f32 %v587, %v589
    %v591 = vadd.f32 %v587, %v590
    %vm592 = vweird.f32 %v586
    %vm593 = vweird.f32 %v587
    %vm594 = vmor %vm592, %vm593
    %v595 = vsel %vm594, %v587, %v591
    %v596 = vand.u32 2147483647, %v586
    %vm597 = vcmp.eq.f32.partialorder %v596, 8.507059e+37
    %v598 = vand.u32 %v586, 2147483648
    %v599 = vor.u32 1.1754944e-38, %v598
    %v600 = vsel %vm597, %v599, %v595
    %v601 = vmul.f32 1.0, %v600
    %v602 = vtanh.pop %v582
    %v603 = vmul.f32 %v601, %v522
    %605 = vrot.lane.b32.xlu0 %v602, 64
    %v606 = vpop.permute.xlu0 %605
    %v608 = vmul.f32 %v601, %v606
    %610 = vrot.lane.b32.xlu0 %v608, 32
    %v611 = vpop.permute.xlu0 %610
    %v613 = vadd.f32 %v603, %v611
    %v614 = vtanh.pop %v613
    %616 = vrot.lane.b32.xlu0 %v614, 64
    %v617 = vpop.permute.xlu0 %616
    %v619 = vmul.f32 %v601, %v617
    %vm620 = vcmp.gt.f32.partialorder %v556, 0.5
    %v621 = vsel %vm620, 1, 0
    %622 = vset.pattern.permute.xlu0 0
    %623 = vperm.xlu0 %622, %v621
    %v624 = vpop.permute.xlu0 %623
    %vm625 = vcmp.eq.s32.totalorder %v624, 1
    %v626 = vsel %vm625, %v619, %v521
    %v627 = vsel %vm625, %v613, %v522
    %v628 = vmul.f32 %v626, %v202
    %630 = vrot.lane.b32.xlu0 %v628, 32
    %v631 = vpop.permute.xlu0 %630
    %v633 = vsel %vm209, %v631, 0.0
    %634 = vadd.xlane.f32.xlu0 %v633
    %v635 = vpop.xlane.xlu0 %634
    %v636 = vadd.f32 %v635, %v214
    %v637 = vxor.u32 %v636, 2147483648
    %v638 = vmul.f32 %v637, 1.442695
    %v639 = vpow.pop %v638
    %v640 = vadd.f32 %v639, 1.0
    %v641 = vrcp.pop %v640
    %v642 = vmul.f32 %v640, %v641
    %v643 = vsub.f32 1.0, %v642
    %v644 = vmul.f32 %v641, %v643
    %v645 = vadd.f32 %v641, %v644
    %vm646 = vweird.f32 %v640
    %vm647 = vweird.f32 %v641
    %vm648 = vmor %vm646, %vm647
    %v649 = vsel %vm648, %v641, %v645
    %v650 = vand.u32 2147483647, %v640
    %vm651 = vcmp.eq.f32.partialorder %v650, 8.507059e+37
    %v652 = vand.u32 %v640, 2147483648
    %v653 = vor.u32 1.1754944e-38, %v652
    %v654 = vsel %vm651, %v653, %v649
    %v655 = vmul.f32 1.0, %v654
    %s656 = scalar_lea.vmem %s7, 8
    %657 = vst.msk [vmem:[%s656] sm:$0x3] %vm236, %v655
    %s658 = scalar_lea.vmem [#allocation2], 10
    %v659 = vld [vmem:[%s658] sm:$0x3]
    %s660 = scalar_lea.vmem %s1, 10
    %v661 = vld [vmem:[%s660] sm:$0x3]
    %663 = vrot.lane.b32.xlu0 %v626, 32
    %v664 = vpop.permute.xlu0 %663
    %v665 = vsel %vm131, %v664, 0
    %667 = vmatpush.msra.mxu0 0.0
    %668 = vmatpush.msra.mxu0 0.0
    %669 = vmatpush.msra.mxu0 0.0
    %670 = vmatpush.msra.mxu0 0.0
    %671 = vmatpush.msra.mxu0 0.0
    %672 = vmatpush.msra.mxu0 0.0
    %673 = vmatpush.msra.mxu0 0.0
    %674 = vmatpush.msra.mxu0 0.0
    %675 = vmatpush.msra.mxu0 0.0
    %676 = vmatpush.msra.mxu0 0.0
    %677 = vmatpush.msra.mxu0 0.0
    %678 = vmatpush.msra.mxu0 0.0
    %679 = vmatpush.msra.mxu0 %v124
    %680 = vmatpush.msra.mxu0 %v123
    %681 = vmatpush.msra.mxu0 %v122
    %682 = vmatpush.msra.mxu0 %v121
    %683 = vmatmul.f32.gmra.mxu0 %v665
    %v684 = vpop.f32.mrf.mxu0
    %v685 = vadd.f32 0.0, %v684
    %686 = vdwg.mxu0
    %v687 = vadd.f32 %v659, %v685
    %v688 = vxor.u32 %v687, 2147483648
    %v689 = vmul.f32 %v688, 1.442695
    %v690 = vpow.pop %v689
    %v691 = vadd.f32 %v690, 1.0
    %v692 = vrcp.pop %v691
    %v693 = vmul.f32 %v691, %v692
    %v694 = vsub.f32 1.0, %v693
    %v695 = vmul.f32 %v692, %v694
    %v696 = vadd.f32 %v692, %v695
    %vm697 = vweird.f32 %v691
    %vm698 = vweird.f32 %v692
    %vm699 = vmor %vm697, %vm698
    %v700 = vsel %vm699, %v692, %v696
    %v701 = vand.u32 2147483647, %v691
    %vm702 = vcmp.eq.f32.partialorder %v701, 8.507059e+37
    %v703 = vand.u32 %v691, 2147483648
    %v704 = vor.u32 1.1754944e-38, %v703
    %v705 = vsel %vm702, %v704, %v700
    %v706 = vmul.f32 1.0, %v705
    %v707 = vtanh.pop %v687
    %v708 = vmul.f32 %v706, %v627
    %710 = vrot.lane.b32.xlu0 %v707, 64
    %v711 = vpop.permute.xlu0 %710
    %v713 = vmul.f32 %v706, %v711
    %715 = vrot.lane.b32.xlu0 %v713, 32
    %v716 = vpop.permute.xlu0 %715
    %v718 = vadd.f32 %v708, %v716
    %v719 = vtanh.pop %v718
    %721 = vrot.lane.b32.xlu0 %v719, 64
    %v722 = vpop.permute.xlu0 %721
    %v724 = vmul.f32 %v706, %v722
    %vm725 = vcmp.gt.f32.partialorder %v661, 0.5
    %v726 = vsel %vm725, 1, 0
    %727 = vset.pattern.permute.xlu0 0
    %728 = vperm.xlu0 %727, %v726
    %v729 = vpop.permute.xlu0 %728
    %vm730 = vcmp.eq.s32.totalorder %v729, 1
    %v731 = vsel %vm730, %v724, %v626
    %v732 = vsel %vm730, %v718, %v627
    %v733 = vmul.f32 %v731, %v202
    %735 = vrot.lane.b32.xlu0 %v733, 32
    %v736 = vpop.permute.xlu0 %735
    %v738 = vsel %vm209, %v736, 0.0
    %739 = vadd.xlane.f32.xlu0 %v738
    %v740 = vpop.xlane.xlu0 %739
    %v741 = vadd.f32 %v740, %v214
    %v742 = vxor.u32 %v741, 2147483648
    %v743 = vmul.f32 %v742, 1.442695
    %v744 = vpow.pop %v743
    %v745 = vadd.f32 %v744, 1.0
    %v746 = vrcp.pop %v745
    %v747 = vmul.f32 %v745, %v746
    %v748 = vsub.f32 1.0, %v747
    %v749 = vmul.f32 %v746, %v748
    %v750 = vadd.f32 %v746, %v749
    %vm751 = vweird.f32 %v745
    %vm752 = vweird.f32 %v746
    %vm753 = vmor %vm751, %vm752
    %v754 = vsel %vm753, %v746, %v750
    %v755 = vand.u32 2147483647, %v745
    %vm756 = vcmp.eq.f32.partialorder %v755, 8.507059e+37
    %v757 = vand.u32 %v745, 2147483648
    %v758 = vor.u32 1.1754944e-38, %v757
    %v759 = vsel %vm756, %v758, %v754
    %v760 = vmul.f32 1.0, %v759
    %s761 = scalar_lea.vmem %s7, 10
    %762 = vst.msk [vmem:[%s761] sm:$0x3] %vm236, %v760
    %s763 = scalar_lea.vmem [#allocation2], 12
    %v764 = vld [vmem:[%s763] sm:$0x3]
    %s765 = scalar_lea.vmem %s1, 12
    %v766 = vld [vmem:[%s765] sm:$0x3]
    %768 = vrot.lane.b32.xlu0 %v731, 32
    %v769 = vpop.permute.xlu0 %768
    %v770 = vsel %vm131, %v769, 0
    %772 = vmatpush.msra.mxu0 0.0
    %773 = vmatpush.msra.mxu0 0.0
    %774 = vmatpush.msra.mxu0 0.0
    %775 = vmatpush.msra.mxu0 0.0
    %776 = vmatpush.msra.mxu0 0.0
    %777 = vmatpush.msra.mxu0 0.0
    %778 = vmatpush.msra.mxu0 0.0
    %779 = vmatpush.msra.mxu0 0.0
    %780 = vmatpush.msra.mxu0 0.0
    %781 = vmatpush.msra.mxu0 0.0
    %782 = vmatpush.msra.mxu0 0.0
    %783 = vmatpush.msra.mxu0 0.0
    %784 = vmatpush.msra.mxu0 %v124
    %785 = vmatpush.msra.mxu0 %v123
    %786 = vmatpush.msra.mxu0 %v122
    %787 = vmatpush.msra.mxu0 %v121
    %788 = vmatmul.f32.gmra.mxu0 %v770
    %v789 = vpop.f32.mrf.mxu0
    %v790 = vadd.f32 0.0, %v789
    %791 = vdwg.mxu0
    %v792 = vadd.f32 %v764, %v790
    %v793 = vxor.u32 %v792, 2147483648
    %v794 = vmul.f32 %v793, 1.442695
    %v795 = vpow.pop %v794
    %v796 = vadd.f32 %v795, 1.0
    %v797 = vrcp.pop %v796
    %v798 = vmul.f32 %v796, %v797
    %v799 = vsub.f32 1.0, %v798
    %v800 = vmul.f32 %v797, %v799
    %v801 = vadd.f32 %v797, %v800
    %vm802 = vweird.f32 %v796
    %vm803 = vweird.f32 %v797
    %vm804 = vmor %vm802, %vm803
    %v805 = vsel %vm804, %v797, %v801
    %v806 = vand.u32 2147483647, %v796
    %vm807 = vcmp.eq.f32.partialorder %v806, 8.507059e+37
    %v808 = vand.u32 %v796, 2147483648
    %v809 = vor.u32 1.1754944e-38, %v808
    %v810 = vsel %vm807, %v809, %v805
    %v811 = vmul.f32 1.0, %v810
    %v812 = vtanh.pop %v792
    %v813 = vmul.f32 %v811, %v732
    %815 = vrot.lane.b32.xlu0 %v812, 64
    %v816 = vpop.permute.xlu0 %815
    %v818 = vmul.f32 %v811, %v816
    %820 = vrot.lane.b32.xlu0 %v818, 32
    %v821 = vpop.permute.xlu0 %820
    %v823 = vadd.f32 %v813, %v821
    %v824 = vtanh.pop %v823
    %826 = vrot.lane.b32.xlu0 %v824, 64
    %v827 = vpop.permute.xlu0 %826
    %v829 = vmul.f32 %v811, %v827
    %vm830 = vcmp.gt.f32.partialorder %v766, 0.5
    %v831 = vsel %vm830, 1, 0
    %832 = vset.pattern.permute.xlu0 0
    %833 = vperm.xlu0 %832, %v831
    %v834 = vpop.permute.xlu0 %833
    %vm835 = vcmp.eq.s32.totalorder %v834, 1
    %v836 = vsel %vm835, %v829, %v731
    %v837 = vsel %vm835, %v823, %v732
    %v838 = vmul.f32 %v836, %v202
    %840 = vrot.lane.b32.xlu0 %v838, 32
    %v841 = vpop.permute.xlu0 %840
    %v843 = vsel %vm209, %v841, 0.0
    %844 = vadd.xlane.f32.xlu0 %v843
    %v845 = vpop.xlane.xlu0 %844
    %v846 = vadd.f32 %v845, %v214
    %v847 = vxor.u32 %v846, 2147483648
    %v848 = vmul.f32 %v847, 1.442695
    %v849 = vpow.pop %v848
    %v850 = vadd.f32 %v849, 1.0
    %v851 = vrcp.pop %v850
    %v852 = vmul.f32 %v850, %v851
    %v853 = vsub.f32 1.0, %v852
    %v854 = vmul.f32 %v851, %v853
    %v855 = vadd.f32 %v851, %v854
    %vm856 = vweird.f32 %v850
    %vm857 = vweird.f32 %v851
    %vm858 = vmor %vm856, %vm857
    %v859 = vsel %vm858, %v851, %v855
    %v860 = vand.u32 2147483647, %v850
    %vm861 = vcmp.eq.f32.partialorder %v860, 8.507059e+37
    %v862 = vand.u32 %v850, 2147483648
    %v863 = vor.u32 1.1754944e-38, %v862
    %v864 = vsel %vm861, %v863, %v859
    %v865 = vmul.f32 1.0, %v864
    %s866 = scalar_lea.vmem %s7, 12
    %867 = vst.msk [vmem:[%s866] sm:$0x3] %vm236, %v865
    %s868 = scalar_lea.vmem [#allocation2], 14
    %v869 = vld [vmem:[%s868] sm:$0x3]
    %s870 = scalar_lea.vmem %s1, 14
    %v871 = vld [vmem:[%s870] sm:$0x3]
    %873 = vrot.lane.b32.xlu0 %v836, 32
    %v874 = vpop.permute.xlu0 %873
    %v875 = vsel %vm131, %v874, 0
    %877 = vmatpush.msra.mxu0 0.0
    %878 = vmatpush.msra.mxu0 0.0
    %879 = vmatpush.msra.mxu0 0.0
    %880 = vmatpush.msra.mxu0 0.0
    %881 = vmatpush.msra.mxu0 0.0
    %882 = vmatpush.msra.mxu0 0.0
    %883 = vmatpush.msra.mxu0 0.0
    %884 = vmatpush.msra.mxu0 0.0
    %885 = vmatpush.msra.mxu0 0.0
    %886 = vmatpush.msra.mxu0 0.0
    %887 = vmatpush.msra.mxu0 0.0
    %888 = vmatpush.msra.mxu0 0.0
    %889 = vmatpush.msra.mxu0 %v124
    %890 = vmatpush.msra.mxu0 %v123
    %891 = vmatpush.msra.mxu0 %v122
    %892 = vmatpush.msra.mxu0 %v121
    %893 = vmatmul.f32.gmra.mxu0 %v875
    %v894 = vpop.f32.mrf.mxu0
    %v895 = vadd.f32 0.0, %v894
    %896 = vdwg.mxu0
    %v897 = vadd.f32 %v869, %v895
    %v898 = vxor.u32 %v897, 2147483648
    %v899 = vmul.f32 %v898, 1.442695
    %v900 = vpow.pop %v899
    %v901 = vadd.f32 %v900, 1.0
    %v902 = vrcp.pop %v901
    %v903 = vmul.f32 %v901, %v902
    %v904 = vsub.f32 1.0, %v903
    %v905 = vmul.f32 %v902, %v904
    %v906 = vadd.f32 %v902, %v905
    %vm907 = vweird.f32 %v901
    %vm908 = vweird.f32 %v902
    %vm909 = vmor %vm907, %vm908
    %v910 = vsel %vm909, %v902, %v906
    %v911 = vand.u32 2147483647, %v901
    %vm912 = vcmp.eq.f32.partialorder %v911, 8.507059e+37
    %v913 = vand.u32 %v901, 2147483648
    %v914 = vor.u32 1.1754944e-38, %v913
    %v915 = vsel %vm912, %v914, %v910
    %v916 = vmul.f32 1.0, %v915
    %v917 = vtanh.pop %v897
    %v918 = vmul.f32 %v916, %v837
    %920 = vrot.lane.b32.xlu0 %v917, 64
    %v921 = vpop.permute.xlu0 %920
    %v923 = vmul.f32 %v916, %v921
    %925 = vrot.lane.b32.xlu0 %v923, 32
    %v926 = vpop.permute.xlu0 %925
    %v928 = vadd.f32 %v918, %v926
    %v929 = vtanh.pop %v928
    %931 = vrot.lane.b32.xlu0 %v929, 64
    %v932 = vpop.permute.xlu0 %931
    %v934 = vmul.f32 %v916, %v932
    %vm935 = vcmp.gt.f32.partialorder %v871, 0.5
    %v936 = vsel %vm935, 1, 0
    %937 = vset.pattern.permute.xlu0 0
    %938 = vperm.xlu0 %937, %v936
    %v939 = vpop.permute.xlu0 %938
    %vm940 = vcmp.eq.s32.totalorder %v939, 1
    %v941 = vsel %vm940, %v934, %v836
    %v942 = vmul.f32 %v941, %v202
    %944 = vrot.lane.b32.xlu0 %v942, 32
    %v945 = vpop.permute.xlu0 %944
    %v947 = vsel %vm209, %v945, 0.0
    %948 = vadd.xlane.f32.xlu0 %v947
    %v949 = vpop.xlane.xlu0 %948
    %v950 = vadd.f32 %v949, %v214
    %v951 = vxor.u32 %v950, 2147483648
    %v952 = vmul.f32 %v951, 1.442695
    %v953 = vpow.pop %v952
    %v954 = vadd.f32 %v953, 1.0
    %v955 = vrcp.pop %v954
    %v956 = vmul.f32 %v954, %v955
    %v957 = vsub.f32 1.0, %v956
    %v958 = vmul.f32 %v955, %v957
    %v959 = vadd.f32 %v955, %v958
    %vm960 = vweird.f32 %v954
    %vm961 = vweird.f32 %v955
    %vm962 = vmor %vm960, %vm961
    %v963 = vsel %vm962, %v955, %v959
    %v964 = vand.u32 2147483647, %v954
    %vm965 = vcmp.eq.f32.partialorder %v964, 8.507059e+37
    %v966 = vand.u32 %v954, 2147483648
    %v967 = vor.u32 1.1754944e-38, %v966
    %v968 = vsel %vm965, %v967, %v963
    %v969 = vmul.f32 1.0, %v968
    %s970 = scalar_lea.vmem %s7, 14
    %971 = vst.msk [vmem:[%s970] sm:$0x3] %vm236, %v969
    // Predicated region
    $region38: #{tpu_custom_call.1} parent=1 // pred_check
      _
    $region39: #{tpu_custom_call.1} parent=1 // pred_check_branch
      %973 = sbr.rel (0) target = $region41
    $region40: #{tpu_custom_call.1} parent=1 // pred_region
      _
    $region41: #{tpu_custom_call.1} parent=1 // pred_fallthru
      _
    // Predicated region
    $region42: #{tpu_custom_call.1} parent=1 // pred_check
      _
    $region43: #{tpu_custom_call.1} parent=1 // pred_check_branch
      %975 = sbr.rel (0) target = $region45
    $region44: #{tpu_custom_call.1} parent=1 // pred_region
      _
    $region45: #{tpu_custom_call.1} parent=1 // pred_fallthru
      _
    %976 = vsyncpa [#allocation5], 1
    %977 = vsyncpa [#allocation7], 1

</llo_original>
